<compile_context>
chip_gen: v5e
topology: v5e:2x2
jax: 0.10.0
libtpu: 0.0.40
codegen_flags: <defaults>
</compile_context>

<pallas_src>
import functools

import jax
import jax.numpy as jnp
from jax import lax
from jax.experimental import pallas as pl
from jax.experimental.pallas import tpu as pltpu


OUT_WIDTH = 128            # lane-dense packed output slab
LOGP_LANE = OUT_WIDTH - 2  # lane holding sum of cross-entropy ("log_prob")
ENT_LANE = OUT_WIDTH - 1   # lane holding sum of entropy


def controller_kernel(gumbel_ref, enc_gate_ref, whh_ref, b_ref, wsoft_ref,
                      out_ref, *, num_layers, num_choices, lstm_size,
                      temperature, tanh_constant):
    L = lstm_size
    C = num_choices

    # ---- hoisted loop-invariant loads (stay in vregs for the whole loop) ----
    enc_gate = enc_gate_ref[...]        # (C+1, 4L)  = encoder @ W_ih^T
    whh = whh_ref[...]                  # (L, 4L)    = W_hh^T
    b = b_ref[...]                      # (1, 4L)    = b_ih + b_hh
    ws = wsoft_ref[...]                 # (L, C)     = w_soft^T
    gumbel = gumbel_ref[...]            # (num_layers, C) pre-drawn Gumbel noise

    lane_c = lax.broadcasted_iota(jnp.int32, (1, C), 1)        # class ids
    lane_e = lax.broadcasted_iota(jnp.int32, (1, C + 1), 1)    # embedding ids
    lane_o = lax.broadcasted_iota(jnp.int32, (1, OUT_WIDTH), 1)  # output lanes

    inv_temp = None if temperature is None else jnp.float32(1.0 / temperature)
    tanh_c = None if tanh_constant is None else jnp.float32(tanh_constant)

    # initial state: input = encoder(0)  -> one-hot at embedding index 0
    onehot_prev = (lane_e == 0).astype(jnp.float32)             # (1, C+1)
    prev_c = jnp.zeros((1, L), jnp.float32)
    prev_h = jnp.zeros((1, L), jnp.float32)
    logp = jnp.zeros((1, 1), jnp.float32)
    ent = jnp.zeros((1, 1), jnp.float32)
    packed = jnp.zeros((1, OUT_WIDTH), jnp.float32)

    # fully unrolled recurrence (num_layers is static and small)
    for step in range(num_layers):
        # ---- fused LSTMCell pre-activation: two independent M=1 MXU ops ----
        pre = (jnp.dot(onehot_prev, enc_gate, preferred_element_type=jnp.float32)
               + jnp.dot(prev_h, whh, preferred_element_type=jnp.float32)
               + b)                                             # (1, 4L)

        # vreg-wide activations, static lane slices (PyTorch gate order i,f,g,o)
        sig = jax.nn.sigmoid(pre)
        th = jnp.tanh(pre)
        i_g = sig[:, 0:L]
        f_g = sig[:, L:2 * L]
        g_g = th[:, 2 * L:3 * L]
        o_g = sig[:, 3 * L:4 * L]
        next_c = f_g * prev_c + i_g * g_g
        next_h = o_g * jnp.tanh(next_c)

        # ---- logits / temperature / tanh constant ----
        logits = jnp.dot(next_h, ws, preferred_element_type=jnp.float32)  # (1, C)
        if inv_temp is not None:
            logits = logits * inv_temp
        if tanh_c is not None:
            logits = tanh_c * jnp.tanh(logits)

        # ---- softmax / log-softmax (reciprocal routed to the EUP slot) ----
        m = jnp.max(logits, axis=-1, keepdims=True)
        z = jnp.exp(logits - m)
        denom = jnp.sum(z, axis=-1, keepdims=True)
        prob = z * pl.reciprocal(denom, approx=True)            # (1, C)
        log_softmax = (logits - m) - jnp.log(denom)             # (1, C)

        # ---- categorical sample via Gumbel-max on pre-drawn noise ----
        perturbed = logits + gumbel[step:step + 1, :]           # (1, C)
        pmax = jnp.max(perturbed, axis=-1, keepdims=True)
        op_id = jnp.min(jnp.where(perturbed == pmax, lane_c, C),
                        axis=-1, keepdims=True)                 # (1, 1) int32

        # accumulate op id into the packed output slab (written once at end)
        packed = jnp.where(lane_o == step, op_id.astype(jnp.float32), packed)

        # ---- cross-entropy(logits, op_id) ("log_prob") and entropy ----
        onehot_c = (lane_c == op_id).astype(jnp.float32)        # (1, C)
        logp = logp - jnp.sum(log_softmax * onehot_c, axis=-1, keepdims=True)
        ent = ent - jnp.sum(log_softmax * prob, axis=-1, keepdims=True)

        # ---- next input = encoder(op_id + 1): just build the one-hot ----
        onehot_prev = (lane_e == (op_id + 1)).astype(jnp.float32)  # (1, C+1)

        prev_c = next_c
        prev_h = next_h

    packed = jnp.where(lane_o == LOGP_LANE, logp, packed)
    packed = jnp.where(lane_o == ENT_LANE, ent, packed)
    out_ref[...] = packed                                        # single lane-dense store


def init_params(key, num_choices, lstm_size):
    """Deterministic uniform(-0.1, 0.1) init, matching reset_param()."""
    L, C = lstm_size, num_choices
    ks = jax.random.split(key, 6)
    u = lambda k, s: jax.random.uniform(k, s, jnp.float32, -0.1, 0.1)
    return dict(
        encoder=u(ks[0], (C + 1, L)),       # nn.Embedding(C+1, L)
        weight_ih=u(ks[1], (4 * L, L)),     # nn.LSTMCell
        weight_hh=u(ks[2], (4 * L, L)),
        bias_ih=u(ks[3], (4 * L,)),
        bias_hh=u(ks[4], (4 * L,)),
        w_soft=u(ks[5], (C, L)),            # nn.Linear(L, C, bias=False)
    )


def controller_forward(params, sample_key, *, num_choices, num_layers,
                       lstm_size, temperature, tanh_constant):
    assert num_layers <= OUT_WIDTH - 2
    L, C = lstm_size, num_choices

    # Fold the embedding lookup into the input-gate matmul:
    #   enc_gate[idx] = encoder[idx] @ W_ih^T   (PyTorch: x @ W_ih^T)
    enc_gate = jnp.dot(params["encoder"], params["weight_ih"].T)        # (C+1, 4L)
    whh_t = params["weight_hh"].T                                       # (L, 4L)
    b_fused = (params["bias_ih"] + params["bias_hh"]).reshape(1, 4 * L)  # (1, 4L)
    wsoft_t = params["w_soft"].T                                        # (L, C)

    # Pre-drawn Gumbel noise, one (C,)-vector per step (RNG hoisted off-kernel).
    gumbel = jax.random.gumbel(sample_key, (num_layers, C), jnp.float32)

    kernel = functools.partial(
        controller_kernel,
        num_layers=num_layers, num_choices=C, lstm_size=L,
        temperature=temperature, tanh_constant=tanh_constant)

    vmem = pl.BlockSpec(memory_space=pltpu.MemorySpace.VMEM)

    packed = pl.pallas_call(
        kernel,
        out_shape=jax.ShapeDtypeStruct((1, OUT_WIDTH), jnp.float32),
        in_specs=[vmem, vmem, vmem, vmem, vmem],
        out_specs=vmem,
    )(gumbel, enc_gate, whh_t, b_fused, wsoft_t)

    op_seq = packed[0, :num_layers].astype(jnp.int32)
    log_prob = packed[0, LOGP_LANE]   # sum of F.cross_entropy terms (as in reference)
    entropy = packed[0, ENT_LANE]
    return op_seq, log_prob, entropy


if __name__ == "__main__":
    # args consistent with the module, small shapes.
    num_choices = 8
    num_layers = 8
    lstm_size = 32
    temperature = 5.0
    tanh_constant = 2.5

    root = jax.random.PRNGKey(0)
    param_key, sample_key = jax.random.split(root)
    params = init_params(param_key, num_choices, lstm_size)

    op_seq, log_prob, entropy = controller_forward(
        params, sample_key,
        num_choices=num_choices, num_layers=num_layers, lstm_size=lstm_size,
        temperature=temperature, tanh_constant=tanh_constant)

    jax.block_until_ready((op_seq, log_prob, entropy))
    assert op_seq.shape == (num_layers,)
    assert log_prob.shape == () and entropy.shape == ()
    assert bool(jnp.all((op_seq >= 0) & (op_seq < num_choices)))
    print("KERNEL_OK")
</pallas_src>

<mosaic_0001>
module attributes {stable_mosaic.version = 11 : i64} {
  func.func @controller_kernel(%arg0: memref<8x8xf32, #tpu.memory_space<vmem>>, %arg1: memref<9x128xf32, #tpu.memory_space<vmem>>, %arg2: memref<32x128xf32, #tpu.memory_space<vmem>>, %arg3: memref<1x128xf32, #tpu.memory_space<vmem>>, %arg4: memref<32x8xf32, #tpu.memory_space<vmem>>, %arg5: memref<1x128xf32, #tpu.memory_space<vmem>>) attributes {dimension_semantics = [], scalar_prefetch = 0 : i64, scratch_operands = 0 : i64, tpu.core_type = #tpu.core_type<tc>} {
    %c0 = arith.constant 0 : index
    %c0_0 = arith.constant 0 : index
    %0 = vector.load %arg1[%c0, %c0_0] : memref<9x128xf32, #tpu.memory_space<vmem>>, vector<9x128xf32>
    %c0_1 = arith.constant 0 : index
    %c0_2 = arith.constant 0 : index
    %1 = vector.load %arg2[%c0_1, %c0_2] : memref<32x128xf32, #tpu.memory_space<vmem>>, vector<32x128xf32>
    %c0_3 = arith.constant 0 : index
    %c0_4 = arith.constant 0 : index
    %2 = vector.load %arg3[%c0_3, %c0_4] : memref<1x128xf32, #tpu.memory_space<vmem>>, vector<1x128xf32>
    %c0_5 = arith.constant 0 : index
    %c0_6 = arith.constant 0 : index
    %3 = vector.load %arg4[%c0_5, %c0_6] : memref<32x8xf32, #tpu.memory_space<vmem>>, vector<32x8xf32>
    %c0_7 = arith.constant 0 : index
    %c0_8 = arith.constant 0 : index
    %4 = vector.load %arg0[%c0_7, %c0_8] : memref<8x8xf32, #tpu.memory_space<vmem>>, vector<8x8xf32>
    %5 = tpu.iota {dimensions = array<i32: 1>} : vector<1x8xi32>
    %6 = tpu.iota {dimensions = array<i32: 1>} : vector<1x9xi32>
    %7 = tpu.iota {dimensions = array<i32: 1>} : vector<1x128xi32>
    %c0_i32 = arith.constant 0 : i32
    %8 = vector.broadcast %c0_i32 : i32 to vector<1x9xi32>
    %9 = arith.cmpi eq, %6, %8 : vector<1x9xi32>
    %10 = arith.extui %9 : vector<1x9xi1> to vector<1x9xi32>
    %11 = arith.sitofp %10 : vector<1x9xi32> to vector<1x9xf32>
    %cst = arith.constant 0.000000e+00 : f32
    %12 = vector.broadcast %cst : f32 to vector<1x32xf32>
    %cst_9 = arith.constant 0.000000e+00 : f32
    %13 = vector.broadcast %cst_9 : f32 to vector<1x32xf32>
    %cst_10 = arith.constant 0.000000e+00 : f32
    %14 = vector.broadcast %cst_10 : f32 to vector<1x1xf32>
    %cst_11 = arith.constant 0.000000e+00 : f32
    %15 = vector.broadcast %cst_11 : f32 to vector<1x1xf32>
    %cst_12 = arith.constant 0.000000e+00 : f32
    %16 = vector.broadcast %cst_12 : f32 to vector<1x128xf32>
    %cst_13 = arith.constant dense<0.000000e+00> : vector<1x128xf32>
    %17 = tpu.matmul %11, %0, %cst_13 {dimension_numbers = #tpu.dot_dimension_numbers<[1], [0], [0], [1], [0, 0, 1, 1], [], []>} : vector<1x9xf32>, vector<9x128xf32>, vector<1x128xf32> -> vector<1x128xf32>
    %cst_14 = arith.constant dense<0.000000e+00> : vector<1x128xf32>
    %18 = tpu.matmul %13, %1, %cst_14 {dimension_numbers = #tpu.dot_dimension_numbers<[1], [0], [0], [1], [0, 0, 1, 1], [], []>} : vector<1x32xf32>, vector<32x128xf32>, vector<1x128xf32> -> vector<1x128xf32>
    %19 = arith.addf %17, %18 : vector<1x128xf32>
    %20 = arith.addf %19, %2 : vector<1x128xf32>
    %21 = arith.negf %20 : vector<1x128xf32>
    %22 = math.exp %21 : vector<1x128xf32>
    %cst_15 = arith.constant 1.000000e+00 : f32
    %23 = vector.broadcast %cst_15 : f32 to vector<1x128xf32>
    %24 = arith.addf %23, %22 : vector<1x128xf32>
    %25 = arith.divf %23, %24 : vector<1x128xf32>
    %26 = math.tanh %20 : vector<1x128xf32>
    %27 = vector.extract_strided_slice %25 {offsets = [0, 0], sizes = [1, 32], strides = [1, 1]} : vector<1x128xf32> to vector<1x32xf32>
    %28 = vector.extract_strided_slice %25 {offsets = [0, 32], sizes = [1, 32], strides = [1, 1]} : vector<1x128xf32> to vector<1x32xf32>
    %29 = vector.extract_strided_slice %26 {offsets = [0, 64], sizes = [1, 32], strides = [1, 1]} : vector<1x128xf32> to vector<1x32xf32>
    %30 = vector.extract_strided_slice %25 {offsets = [0, 96], sizes = [1, 32], strides = [1, 1]} : vector<1x128xf32> to vector<1x32xf32>
    %31 = arith.mulf %28, %12 : vector<1x32xf32>
    %32 = arith.mulf %27, %29 : vector<1x32xf32>
    %33 = arith.addf %31, %32 : vector<1x32xf32>
    %34 = math.tanh %33 : vector<1x32xf32>
    %35 = arith.mulf %30, %34 : vector<1x32xf32>
    %cst_16 = arith.constant dense<0.000000e+00> : vector<1x8xf32>
    %36 = tpu.matmul %35, %3, %cst_16 {dimension_numbers = #tpu.dot_dimension_numbers<[1], [0], [0], [1], [0, 0, 1, 1], [], []>} : vector<1x32xf32>, vector<32x8xf32>, vector<1x8xf32> -> vector<1x8xf32>
    %cst_17 = arith.constant 2.000000e-01 : f32
    %37 = vector.broadcast %cst_17 : f32 to vector<1x8xf32>
    %38 = arith.mulf %36, %37 : vector<1x8xf32>
    %39 = math.tanh %38 : vector<1x8xf32>
    %cst_18 = arith.constant 2.500000e+00 : f32
    %40 = vector.broadcast %cst_18 : f32 to vector<1x8xf32>
    %41 = arith.mulf %40, %39 : vector<1x8xf32>
    %cst_19 = arith.constant dense<0xFF800000> : vector<1xf32>
    %42 = vector.multi_reduction <maximumf>, %41, %cst_19 [1] : vector<1x8xf32> to vector<1xf32>
    %43 = vector.shape_cast %42 : vector<1xf32> to vector<1x1xf32>
    %44 = vector.broadcast %43 : vector<1x1xf32> to vector<1x8xf32>
    %45 = arith.subf %41, %44 : vector<1x8xf32>
    %46 = math.exp %45 : vector<1x8xf32>
    %cst_20 = arith.constant dense<0.000000e+00> : vector<1xf32>
    %47 = vector.multi_reduction <add>, %46, %cst_20 [1] : vector<1x8xf32> to vector<1xf32>
    %48 = vector.shape_cast %47 : vector<1xf32> to vector<1x1xf32>
    %49 = tpu.reciprocal %48 {approx = true} : vector<1x1xf32> -> vector<1x1xf32>
    %50 = vector.broadcast %49 : vector<1x1xf32> to vector<1x8xf32>
    %51 = arith.mulf %46, %50 : vector<1x8xf32>
    %52 = vector.broadcast %43 : vector<1x1xf32> to vector<1x8xf32>
    %53 = arith.subf %41, %52 : vector<1x8xf32>
    %54 = math.log %48 : vector<1x1xf32>
    %55 = vector.broadcast %54 : vector<1x1xf32> to vector<1x8xf32>
    %56 = arith.subf %53, %55 : vector<1x8xf32>
    %57 = vector.extract_strided_slice %4 {offsets = [0, 0], sizes = [1, 8], strides = [1, 1]} : vector<8x8xf32> to vector<1x8xf32>
    %58 = arith.addf %41, %57 : vector<1x8xf32>
    %cst_21 = arith.constant dense<0xFF800000> : vector<1xf32>
    %59 = vector.multi_reduction <maximumf>, %58, %cst_21 [1] : vector<1x8xf32> to vector<1xf32>
    %60 = vector.shape_cast %59 : vector<1xf32> to vector<1x1xf32>
    %61 = vector.broadcast %60 : vector<1x1xf32> to vector<1x8xf32>
    %62 = arith.cmpf oeq, %58, %61 : vector<1x8xf32>
    %c8_i32 = arith.constant 8 : i32
    %63 = vector.broadcast %c8_i32 : i32 to vector<1x8xi32>
    %64 = arith.select %62, %5, %63 : vector<1x8xi1>, vector<1x8xi32>
    %cst_22 = arith.constant dense<2147483647> : vector<1xi32>
    %65 = vector.multi_reduction <minsi>, %64, %cst_22 [1] : vector<1x8xi32> to vector<1xi32>
    %66 = vector.shape_cast %65 : vector<1xi32> to vector<1x1xi32>
    %c0_i32_23 = arith.constant 0 : i32
    %67 = vector.broadcast %c0_i32_23 : i32 to vector<1x128xi32>
    %68 = arith.cmpi eq, %7, %67 : vector<1x128xi32>
    %69 = arith.sitofp %66 : vector<1x1xi32> to vector<1x1xf32>
    %70 = vector.shape_cast %69 : vector<1x1xf32> to vector<1x1xf32>
    %71 = vector.broadcast %70 : vector<1x1xf32> to vector<1x128xf32>
    %72 = arith.select %68, %71, %16 : vector<1x128xi1>, vector<1x128xf32>
    %73 = vector.broadcast %66 : vector<1x1xi32> to vector<1x8xi32>
    %74 = arith.cmpi eq, %5, %73 : vector<1x8xi32>
    %75 = arith.extui %74 : vector<1x8xi1> to vector<1x8xi32>
    %76 = arith.sitofp %75 : vector<1x8xi32> to vector<1x8xf32>
    %77 = arith.mulf %56, %76 : vector<1x8xf32>
    %cst_24 = arith.constant dense<0.000000e+00> : vector<1xf32>
    %78 = vector.multi_reduction <add>, %77, %cst_24 [1] : vector<1x8xf32> to vector<1xf32>
    %79 = vector.shape_cast %78 : vector<1xf32> to vector<1x1xf32>
    %80 = arith.subf %14, %79 : vector<1x1xf32>
    %81 = arith.mulf %56, %51 : vector<1x8xf32>
    %cst_25 = arith.constant dense<0.000000e+00> : vector<1xf32>
    %82 = vector.multi_reduction <add>, %81, %cst_25 [1] : vector<1x8xf32> to vector<1xf32>
    %83 = vector.shape_cast %82 : vector<1xf32> to vector<1x1xf32>
    %84 = arith.subf %15, %83 : vector<1x1xf32>
    %c1_i32 = arith.constant 1 : i32
    %85 = vector.broadcast %c1_i32 : i32 to vector<1x1xi32>
    %86 = arith.addi %66, %85 : vector<1x1xi32>
    %87 = vector.broadcast %86 : vector<1x1xi32> to vector<1x9xi32>
    %88 = arith.cmpi eq, %6, %87 : vector<1x9xi32>
    %89 = arith.extui %88 : vector<1x9xi1> to vector<1x9xi32>
    %90 = arith.sitofp %89 : vector<1x9xi32> to vector<1x9xf32>
    %cst_26 = arith.constant dense<0.000000e+00> : vector<1x128xf32>
    %91 = tpu.matmul %90, %0, %cst_26 {dimension_numbers = #tpu.dot_dimension_numbers<[1], [0], [0], [1], [0, 0, 1, 1], [], []>} : vector<1x9xf32>, vector<9x128xf32>, vector<1x128xf32> -> vector<1x128xf32>
    %cst_27 = arith.constant dense<0.000000e+00> : vector<1x128xf32>
    %92 = tpu.matmul %35, %1, %cst_27 {dimension_numbers = #tpu.dot_dimension_numbers<[1], [0], [0], [1], [0, 0, 1, 1], [], []>} : vector<1x32xf32>, vector<32x128xf32>, vector<1x128xf32> -> vector<1x128xf32>
    %93 = arith.addf %91, %92 : vector<1x128xf32>
    %94 = arith.addf %93, %2 : vector<1x128xf32>
    %95 = arith.negf %94 : vector<1x128xf32>
    %96 = math.exp %95 : vector<1x128xf32>
    %cst_28 = arith.constant 1.000000e+00 : f32
    %97 = vector.broadcast %cst_28 : f32 to vector<1x128xf32>
    %98 = arith.addf %97, %96 : vector<1x128xf32>
    %99 = arith.divf %97, %98 : vector<1x128xf32>
    %100 = math.tanh %94 : vector<1x128xf32>
    %101 = vector.extract_strided_slice %99 {offsets = [0, 0], sizes = [1, 32], strides = [1, 1]} : vector<1x128xf32> to vector<1x32xf32>
    %102 = vector.extract_strided_slice %99 {offsets = [0, 32], sizes = [1, 32], strides = [1, 1]} : vector<1x128xf32> to vector<1x32xf32>
    %103 = vector.extract_strided_slice %100 {offsets = [0, 64], sizes = [1, 32], strides = [1, 1]} : vector<1x128xf32> to vector<1x32xf32>
    %104 = vector.extract_strided_slice %99 {offsets = [0, 96], sizes = [1, 32], strides = [1, 1]} : vector<1x128xf32> to vector<1x32xf32>
    %105 = arith.mulf %102, %33 : vector<1x32xf32>
    %106 = arith.mulf %101, %103 : vector<1x32xf32>
    %107 = arith.addf %105, %106 : vector<1x32xf32>
    %108 = math.tanh %107 : vector<1x32xf32>
    %109 = arith.mulf %104, %108 : vector<1x32xf32>
    %cst_29 = arith.constant dense<0.000000e+00> : vector<1x8xf32>
    %110 = tpu.matmul %109, %3, %cst_29 {dimension_numbers = #tpu.dot_dimension_numbers<[1], [0], [0], [1], [0, 0, 1, 1], [], []>} : vector<1x32xf32>, vector<32x8xf32>, vector<1x8xf32> -> vector<1x8xf32>
    %cst_30 = arith.constant 2.000000e-01 : f32
    %111 = vector.broadcast %cst_30 : f32 to vector<1x8xf32>
    %112 = arith.mulf %110, %111 : vector<1x8xf32>
    %113 = math.tanh %112 : vector<1x8xf32>
    %cst_31 = arith.constant 2.500000e+00 : f32
    %114 = vector.broadcast %cst_31 : f32 to vector<1x8xf32>
    %115 = arith.mulf %114, %113 : vector<1x8xf32>
    %cst_32 = arith.constant dense<0xFF800000> : vector<1xf32>
    %116 = vector.multi_reduction <maximumf>, %115, %cst_32 [1] : vector<1x8xf32> to vector<1xf32>
    %117 = vector.shape_cast %116 : vector<1xf32> to vector<1x1xf32>
    %118 = vector.broadcast %117 : vector<1x1xf32> to vector<1x8xf32>
    %119 = arith.subf %115, %118 : vector<1x8xf32>
    %120 = math.exp %119 : vector<1x8xf32>
    %cst_33 = arith.constant dense<0.000000e+00> : vector<1xf32>
    %121 = vector.multi_reduction <add>, %120, %cst_33 [1] : vector<1x8xf32> to vector<1xf32>
    %122 = vector.shape_cast %121 : vector<1xf32> to vector<1x1xf32>
    %123 = tpu.reciprocal %122 {approx = true} : vector<1x1xf32> -> vector<1x1xf32>
    %124 = vector.broadcast %123 : vector<1x1xf32> to vector<1x8xf32>
    %125 = arith.mulf %120, %124 : vector<1x8xf32>
    %126 = vector.broadcast %117 : vector<1x1xf32> to vector<1x8xf32>
    %127 = arith.subf %115, %126 : vector<1x8xf32>
    %128 = math.log %122 : vector<1x1xf32>
    %129 = vector.broadcast %128 : vector<1x1xf32> to vector<1x8xf32>
    %130 = arith.subf %127, %129 : vector<1x8xf32>
    %131 = vector.extract_strided_slice %4 {offsets = [1, 0], sizes = [1, 8], strides = [1, 1]} : vector<8x8xf32> to vector<1x8xf32>
    %132 = arith.addf %115, %131 : vector<1x8xf32>
    %cst_34 = arith.constant dense<0xFF800000> : vector<1xf32>
    %133 = vector.multi_reduction <maximumf>, %132, %cst_34 [1] : vector<1x8xf32> to vector<1xf32>
    %134 = vector.shape_cast %133 : vector<1xf32> to vector<1x1xf32>
    %135 = vector.broadcast %134 : vector<1x1xf32> to vector<1x8xf32>
    %136 = arith.cmpf oeq, %132, %135 : vector<1x8xf32>
    %c8_i32_35 = arith.constant 8 : i32
    %137 = vector.broadcast %c8_i32_35 : i32 to vector<1x8xi32>
    %138 = arith.select %136, %5, %137 : vector<1x8xi1>, vector<1x8xi32>
    %cst_36 = arith.constant dense<2147483647> : vector<1xi32>
    %139 = vector.multi_reduction <minsi>, %138, %cst_36 [1] : vector<1x8xi32> to vector<1xi32>
    %140 = vector.shape_cast %139 : vector<1xi32> to vector<1x1xi32>
    %c1_i32_37 = arith.constant 1 : i32
    %141 = vector.broadcast %c1_i32_37 : i32 to vector<1x128xi32>
    %142 = arith.cmpi eq, %7, %141 : vector<1x128xi32>
    %143 = arith.sitofp %140 : vector<1x1xi32> to vector<1x1xf32>
    %144 = vector.shape_cast %143 : vector<1x1xf32> to vector<1x1xf32>
    %145 = vector.broadcast %144 : vector<1x1xf32> to vector<1x128xf32>
    %146 = arith.select %142, %145, %72 : vector<1x128xi1>, vector<1x128xf32>
    %147 = vector.broadcast %140 : vector<1x1xi32> to vector<1x8xi32>
    %148 = arith.cmpi eq, %5, %147 : vector<1x8xi32>
    %149 = arith.extui %148 : vector<1x8xi1> to vector<1x8xi32>
    %150 = arith.sitofp %149 : vector<1x8xi32> to vector<1x8xf32>
    %151 = arith.mulf %130, %150 : vector<1x8xf32>
    %cst_38 = arith.constant dense<0.000000e+00> : vector<1xf32>
    %152 = vector.multi_reduction <add>, %151, %cst_38 [1] : vector<1x8xf32> to vector<1xf32>
    %153 = vector.shape_cast %152 : vector<1xf32> to vector<1x1xf32>
    %154 = arith.subf %80, %153 : vector<1x1xf32>
    %155 = arith.mulf %130, %125 : vector<1x8xf32>
    %cst_39 = arith.constant dense<0.000000e+00> : vector<1xf32>
    %156 = vector.multi_reduction <add>, %155, %cst_39 [1] : vector<1x8xf32> to vector<1xf32>
    %157 = vector.shape_cast %156 : vector<1xf32> to vector<1x1xf32>
    %158 = arith.subf %84, %157 : vector<1x1xf32>
    %c1_i32_40 = arith.constant 1 : i32
    %159 = vector.broadcast %c1_i32_40 : i32 to vector<1x1xi32>
    %160 = arith.addi %140, %159 : vector<1x1xi32>
    %161 = vector.broadcast %160 : vector<1x1xi32> to vector<1x9xi32>
    %162 = arith.cmpi eq, %6, %161 : vector<1x9xi32>
    %163 = arith.extui %162 : vector<1x9xi1> to vector<1x9xi32>
    %164 = arith.sitofp %163 : vector<1x9xi32> to vector<1x9xf32>
    %cst_41 = arith.constant dense<0.000000e+00> : vector<1x128xf32>
    %165 = tpu.matmul %164, %0, %cst_41 {dimension_numbers = #tpu.dot_dimension_numbers<[1], [0], [0], [1], [0, 0, 1, 1], [], []>} : vector<1x9xf32>, vector<9x128xf32>, vector<1x128xf32> -> vector<1x128xf32>
    %cst_42 = arith.constant dense<0.000000e+00> : vector<1x128xf32>
    %166 = tpu.matmul %109, %1, %cst_42 {dimension_numbers = #tpu.dot_dimension_numbers<[1], [0], [0], [1], [0, 0, 1, 1], [], []>} : vector<1x32xf32>, vector<32x128xf32>, vector<1x128xf32> -> vector<1x128xf32>
    %167 = arith.addf %165, %166 : vector<1x128xf32>
    %168 = arith.addf %167, %2 : vector<1x128xf32>
    %169 = arith.negf %168 : vector<1x128xf32>
    %170 = math.exp %169 : vector<1x128xf32>
    %cst_43 = arith.constant 1.000000e+00 : f32
    %171 = vector.broadcast %cst_43 : f32 to vector<1x128xf32>
    %172 = arith.addf %171, %170 : vector<1x128xf32>
    %173 = arith.divf %171, %172 : vector<1x128xf32>
    %174 = math.tanh %168 : vector<1x128xf32>
    %175 = vector.extract_strided_slice %173 {offsets = [0, 0], sizes = [1, 32], strides = [1, 1]} : vector<1x128xf32> to vector<1x32xf32>
    %176 = vector.extract_strided_slice %173 {offsets = [0, 32], sizes = [1, 32], strides = [1, 1]} : vector<1x128xf32> to vector<1x32xf32>
    %177 = vector.extract_strided_slice %174 {offsets = [0, 64], sizes = [1, 32], strides = [1, 1]} : vector<1x128xf32> to vector<1x32xf32>
    %178 = vector.extract_strided_slice %173 {offsets = [0, 96], sizes = [1, 32], strides = [1, 1]} : vector<1x128xf32> to vector<1x32xf32>
    %179 = arith.mulf %176, %107 : vector<1x32xf32>
    %180 = arith.mulf %175, %177 : vector<1x32xf32>
    %181 = arith.addf %179, %180 : vector<1x32xf32>
    %182 = math.tanh %181 : vector<1x32xf32>
    %183 = arith.mulf %178, %182 : vector<1x32xf32>
    %cst_44 = arith.constant dense<0.000000e+00> : vector<1x8xf32>
    %184 = tpu.matmul %183, %3, %cst_44 {dimension_numbers = #tpu.dot_dimension_numbers<[1], [0], [0], [1], [0, 0, 1, 1], [], []>} : vector<1x32xf32>, vector<32x8xf32>, vector<1x8xf32> -> vector<1x8xf32>
    %cst_45 = arith.constant 2.000000e-01 : f32
    %185 = vector.broadcast %cst_45 : f32 to vector<1x8xf32>
    %186 = arith.mulf %184, %185 : vector<1x8xf32>
    %187 = math.tanh %186 : vector<1x8xf32>
    %cst_46 = arith.constant 2.500000e+00 : f32
    %188 = vector.broadcast %cst_46 : f32 to vector<1x8xf32>
    %189 = arith.mulf %188, %187 : vector<1x8xf32>
    %cst_47 = arith.constant dense<0xFF800000> : vector<1xf32>
    %190 = vector.multi_reduction <maximumf>, %189, %cst_47 [1] : vector<1x8xf32> to vector<1xf32>
    %191 = vector.shape_cast %190 : vector<1xf32> to vector<1x1xf32>
    %192 = vector.broadcast %191 : vector<1x1xf32> to vector<1x8xf32>
    %193 = arith.subf %189, %192 : vector<1x8xf32>
    %194 = math.exp %193 : vector<1x8xf32>
    %cst_48 = arith.constant dense<0.000000e+00> : vector<1xf32>
    %195 = vector.multi_reduction <add>, %194, %cst_48 [1] : vector<1x8xf32> to vector<1xf32>
    %196 = vector.shape_cast %195 : vector<1xf32> to vector<1x1xf32>
    %197 = tpu.reciprocal %196 {approx = true} : vector<1x1xf32> -> vector<1x1xf32>
    %198 = vector.broadcast %197 : vector<1x1xf32> to vector<1x8xf32>
    %199 = arith.mulf %194, %198 : vector<1x8xf32>
    %200 = vector.broadcast %191 : vector<1x1xf32> to vector<1x8xf32>
    %201 = arith.subf %189, %200 : vector<1x8xf32>
    %202 = math.log %196 : vector<1x1xf32>
    %203 = vector.broadcast %202 : vector<1x1xf32> to vector<1x8xf32>
    %204 = arith.subf %201, %203 : vector<1x8xf32>
    %205 = vector.extract_strided_slice %4 {offsets = [2, 0], sizes = [1, 8], strides = [1, 1]} : vector<8x8xf32> to vector<1x8xf32>
    %206 = arith.addf %189, %205 : vector<1x8xf32>
    %cst_49 = arith.constant dense<0xFF800000> : vector<1xf32>
    %207 = vector.multi_reduction <maximumf>, %206, %cst_49 [1] : vector<1x8xf32> to vector<1xf32>
    %208 = vector.shape_cast %207 : vector<1xf32> to vector<1x1xf32>
    %209 = vector.broadcast %208 : vector<1x1xf32> to vector<1x8xf32>
    %210 = arith.cmpf oeq, %206, %209 : vector<1x8xf32>
    %c8_i32_50 = arith.constant 8 : i32
    %211 = vector.broadcast %c8_i32_50 : i32 to vector<1x8xi32>
    %212 = arith.select %210, %5, %211 : vector<1x8xi1>, vector<1x8xi32>
    %cst_51 = arith.constant dense<2147483647> : vector<1xi32>
    %213 = vector.multi_reduction <minsi>, %212, %cst_51 [1] : vector<1x8xi32> to vector<1xi32>
    %214 = vector.shape_cast %213 : vector<1xi32> to vector<1x1xi32>
    %c2_i32 = arith.constant 2 : i32
    %215 = vector.broadcast %c2_i32 : i32 to vector<1x128xi32>
    %216 = arith.cmpi eq, %7, %215 : vector<1x128xi32>
    %217 = arith.sitofp %214 : vector<1x1xi32> to vector<1x1xf32>
    %218 = vector.shape_cast %217 : vector<1x1xf32> to vector<1x1xf32>
    %219 = vector.broadcast %218 : vector<1x1xf32> to vector<1x128xf32>
    %220 = arith.select %216, %219, %146 : vector<1x128xi1>, vector<1x128xf32>
    %221 = vector.broadcast %214 : vector<1x1xi32> to vector<1x8xi32>
    %222 = arith.cmpi eq, %5, %221 : vector<1x8xi32>
    %223 = arith.extui %222 : vector<1x8xi1> to vector<1x8xi32>
    %224 = arith.sitofp %223 : vector<1x8xi32> to vector<1x8xf32>
    %225 = arith.mulf %204, %224 : vector<1x8xf32>
    %cst_52 = arith.constant dense<0.000000e+00> : vector<1xf32>
    %226 = vector.multi_reduction <add>, %225, %cst_52 [1] : vector<1x8xf32> to vector<1xf32>
    %227 = vector.shape_cast %226 : vector<1xf32> to vector<1x1xf32>
    %228 = arith.subf %154, %227 : vector<1x1xf32>
    %229 = arith.mulf %204, %199 : vector<1x8xf32>
    %cst_53 = arith.constant dense<0.000000e+00> : vector<1xf32>
    %230 = vector.multi_reduction <add>, %229, %cst_53 [1] : vector<1x8xf32> to vector<1xf32>
    %231 = vector.shape_cast %230 : vector<1xf32> to vector<1x1xf32>
    %232 = arith.subf %158, %231 : vector<1x1xf32>
    %c1_i32_54 = arith.constant 1 : i32
    %233 = vector.broadcast %c1_i32_54 : i32 to vector<1x1xi32>
    %234 = arith.addi %214, %233 : vector<1x1xi32>
    %235 = vector.broadcast %234 : vector<1x1xi32> to vector<1x9xi32>
    %236 = arith.cmpi eq, %6, %235 : vector<1x9xi32>
    %237 = arith.extui %236 : vector<1x9xi1> to vector<1x9xi32>
    %238 = arith.sitofp %237 : vector<1x9xi32> to vector<1x9xf32>
    %cst_55 = arith.constant dense<0.000000e+00> : vector<1x128xf32>
    %239 = tpu.matmul %238, %0, %cst_55 {dimension_numbers = #tpu.dot_dimension_numbers<[1], [0], [0], [1], [0, 0, 1, 1], [], []>} : vector<1x9xf32>, vector<9x128xf32>, vector<1x128xf32> -> vector<1x128xf32>
    %cst_56 = arith.constant dense<0.000000e+00> : vector<1x128xf32>
    %240 = tpu.matmul %183, %1, %cst_56 {dimension_numbers = #tpu.dot_dimension_numbers<[1], [0], [0], [1], [0, 0, 1, 1], [], []>} : vector<1x32xf32>, vector<32x128xf32>, vector<1x128xf32> -> vector<1x128xf32>
    %241 = arith.addf %239, %240 : vector<1x128xf32>
    %242 = arith.addf %241, %2 : vector<1x128xf32>
    %243 = arith.negf %242 : vector<1x128xf32>
    %244 = math.exp %243 : vector<1x128xf32>
    %cst_57 = arith.constant 1.000000e+00 : f32
    %245 = vector.broadcast %cst_57 : f32 to vector<1x128xf32>
    %246 = arith.addf %245, %244 : vector<1x128xf32>
    %247 = arith.divf %245, %246 : vector<1x128xf32>
    %248 = math.tanh %242 : vector<1x128xf32>
    %249 = vector.extract_strided_slice %247 {offsets = [0, 0], sizes = [1, 32], strides = [1, 1]} : vector<1x128xf32> to vector<1x32xf32>
    %250 = vector.extract_strided_slice %247 {offsets = [0, 32], sizes = [1, 32], strides = [1, 1]} : vector<1x128xf32> to vector<1x32xf32>
    %251 = vector.extract_strided_slice %248 {offsets = [0, 64], sizes = [1, 32], strides = [1, 1]} : vector<1x128xf32> to vector<1x32xf32>
    %252 = vector.extract_strided_slice %247 {offsets = [0, 96], sizes = [1, 32], strides = [1, 1]} : vector<1x128xf32> to vector<1x32xf32>
    %253 = arith.mulf %250, %181 : vector<1x32xf32>
    %254 = arith.mulf %249, %251 : vector<1x32xf32>
    %255 = arith.addf %253, %254 : vector<1x32xf32>
    %256 = math.tanh %255 : vector<1x32xf32>
    %257 = arith.mulf %252, %256 : vector<1x32xf32>
    %cst_58 = arith.constant dense<0.000000e+00> : vector<1x8xf32>
    %258 = tpu.matmul %257, %3, %cst_58 {dimension_numbers = #tpu.dot_dimension_numbers<[1], [0], [0], [1], [0, 0, 1, 1], [], []>} : vector<1x32xf32>, vector<32x8xf32>, vector<1x8xf32> -> vector<1x8xf32>
    %cst_59 = arith.constant 2.000000e-01 : f32
    %259 = vector.broadcast %cst_59 : f32 to vector<1x8xf32>
    %260 = arith.mulf %258, %259 : vector<1x8xf32>
    %261 = math.tanh %260 : vector<1x8xf32>
    %cst_60 = arith.constant 2.500000e+00 : f32
    %262 = vector.broadcast %cst_60 : f32 to vector<1x8xf32>
    %263 = arith.mulf %262, %261 : vector<1x8xf32>
    %cst_61 = arith.constant dense<0xFF800000> : vector<1xf32>
    %264 = vector.multi_reduction <maximumf>, %263, %cst_61 [1] : vector<1x8xf32> to vector<1xf32>
    %265 = vector.shape_cast %264 : vector<1xf32> to vector<1x1xf32>
    %266 = vector.broadcast %265 : vector<1x1xf32> to vector<1x8xf32>
    %267 = arith.subf %263, %266 : vector<1x8xf32>
    %268 = math.exp %267 : vector<1x8xf32>
    %cst_62 = arith.constant dense<0.000000e+00> : vector<1xf32>
    %269 = vector.multi_reduction <add>, %268, %cst_62 [1] : vector<1x8xf32> to vector<1xf32>
    %270 = vector.shape_cast %269 : vector<1xf32> to vector<1x1xf32>
    %271 = tpu.reciprocal %270 {approx = true} : vector<1x1xf32> -> vector<1x1xf32>
    %272 = vector.broadcast %271 : vector<1x1xf32> to vector<1x8xf32>
    %273 = arith.mulf %268, %272 : vector<1x8xf32>
    %274 = vector.broadcast %265 : vector<1x1xf32> to vector<1x8xf32>
    %275 = arith.subf %263, %274 : vector<1x8xf32>
    %276 = math.log %270 : vector<1x1xf32>
    %277 = vector.broadcast %276 : vector<1x1xf32> to vector<1x8xf32>
    %278 = arith.subf %275, %277 : vector<1x8xf32>
    %279 = vector.extract_strided_slice %4 {offsets = [3, 0], sizes = [1, 8], strides = [1, 1]} : vector<8x8xf32> to vector<1x8xf32>
    %280 = arith.addf %263, %279 : vector<1x8xf32>
    %cst_63 = arith.constant dense<0xFF800000> : vector<1xf32>
    %281 = vector.multi_reduction <maximumf>, %280, %cst_63 [1] : vector<1x8xf32> to vector<1xf32>
    %282 = vector.shape_cast %281 : vector<1xf32> to vector<1x1xf32>
    %283 = vector.broadcast %282 : vector<1x1xf32> to vector<1x8xf32>
    %284 = arith.cmpf oeq, %280, %283 : vector<1x8xf32>
    %c8_i32_64 = arith.constant 8 : i32
    %285 = vector.broadcast %c8_i32_64 : i32 to vector<1x8xi32>
    %286 = arith.select %284, %5, %285 : vector<1x8xi1>, vector<1x8xi32>
    %cst_65 = arith.constant dense<2147483647> : vector<1xi32>
    %287 = vector.multi_reduction <minsi>, %286, %cst_65 [1] : vector<1x8xi32> to vector<1xi32>
    %288 = vector.shape_cast %287 : vector<1xi32> to vector<1x1xi32>
    %c3_i32 = arith.constant 3 : i32
    %289 = vector.broadcast %c3_i32 : i32 to vector<1x128xi32>
    %290 = arith.cmpi eq, %7, %289 : vector<1x128xi32>
    %291 = arith.sitofp %288 : vector<1x1xi32> to vector<1x1xf32>
    %292 = vector.shape_cast %291 : vector<1x1xf32> to vector<1x1xf32>
    %293 = vector.broadcast %292 : vector<1x1xf32> to vector<1x128xf32>
    %294 = arith.select %290, %293, %220 : vector<1x128xi1>, vector<1x128xf32>
    %295 = vector.broadcast %288 : vector<1x1xi32> to vector<1x8xi32>
    %296 = arith.cmpi eq, %5, %295 : vector<1x8xi32>
    %297 = arith.extui %296 : vector<1x8xi1> to vector<1x8xi32>
    %298 = arith.sitofp %297 : vector<1x8xi32> to vector<1x8xf32>
    %299 = arith.mulf %278, %298 : vector<1x8xf32>
    %cst_66 = arith.constant dense<0.000000e+00> : vector<1xf32>
    %300 = vector.multi_reduction <add>, %299, %cst_66 [1] : vector<1x8xf32> to vector<1xf32>
    %301 = vector.shape_cast %300 : vector<1xf32> to vector<1x1xf32>
    %302 = arith.subf %228, %301 : vector<1x1xf32>
    %303 = arith.mulf %278, %273 : vector<1x8xf32>
    %cst_67 = arith.constant dense<0.000000e+00> : vector<1xf32>
    %304 = vector.multi_reduction <add>, %303, %cst_67 [1] : vector<1x8xf32> to vector<1xf32>
    %305 = vector.shape_cast %304 : vector<1xf32> to vector<1x1xf32>
    %306 = arith.subf %232, %305 : vector<1x1xf32>
    %c1_i32_68 = arith.constant 1 : i32
    %307 = vector.broadcast %c1_i32_68 : i32 to vector<1x1xi32>
    %308 = arith.addi %288, %307 : vector<1x1xi32>
    %309 = vector.broadcast %308 : vector<1x1xi32> to vector<1x9xi32>
    %310 = arith.cmpi eq, %6, %309 : vector<1x9xi32>
    %311 = arith.extui %310 : vector<1x9xi1> to vector<1x9xi32>
    %312 = arith.sitofp %311 : vector<1x9xi32> to vector<1x9xf32>
    %cst_69 = arith.constant dense<0.000000e+00> : vector<1x128xf32>
    %313 = tpu.matmul %312, %0, %cst_69 {dimension_numbers = #tpu.dot_dimension_numbers<[1], [0], [0], [1], [0, 0, 1, 1], [], []>} : vector<1x9xf32>, vector<9x128xf32>, vector<1x128xf32> -> vector<1x128xf32>
    %cst_70 = arith.constant dense<0.000000e+00> : vector<1x128xf32>
    %314 = tpu.matmul %257, %1, %cst_70 {dimension_numbers = #tpu.dot_dimension_numbers<[1], [0], [0], [1], [0, 0, 1, 1], [], []>} : vector<1x32xf32>, vector<32x128xf32>, vector<1x128xf32> -> vector<1x128xf32>
    %315 = arith.addf %313, %314 : vector<1x128xf32>
    %316 = arith.addf %315, %2 : vector<1x128xf32>
    %317 = arith.negf %316 : vector<1x128xf32>
    %318 = math.exp %317 : vector<1x128xf32>
    %cst_71 = arith.constant 1.000000e+00 : f32
    %319 = vector.broadcast %cst_71 : f32 to vector<1x128xf32>
    %320 = arith.addf %319, %318 : vector<1x128xf32>
    %321 = arith.divf %319, %320 : vector<1x128xf32>
    %322 = math.tanh %316 : vector<1x128xf32>
    %323 = vector.extract_strided_slice %321 {offsets = [0, 0], sizes = [1, 32], strides = [1, 1]} : vector<1x128xf32> to vector<1x32xf32>
    %324 = vector.extract_strided_slice %321 {offsets = [0, 32], sizes = [1, 32], strides = [1, 1]} : vector<1x128xf32> to vector<1x32xf32>
    %325 = vector.extract_strided_slice %322 {offsets = [0, 64], sizes = [1, 32], strides = [1, 1]} : vector<1x128xf32> to vector<1x32xf32>
    %326 = vector.extract_strided_slice %321 {offsets = [0, 96], sizes = [1, 32], strides = [1, 1]} : vector<1x128xf32> to vector<1x32xf32>
    %327 = arith.mulf %324, %255 : vector<1x32xf32>
    %328 = arith.mulf %323, %325 : vector<1x32xf32>
    %329 = arith.addf %327, %328 : vector<1x32xf32>
    %330 = math.tanh %329 : vector<1x32xf32>
    %331 = arith.mulf %326, %330 : vector<1x32xf32>
    %cst_72 = arith.constant dense<0.000000e+00> : vector<1x8xf32>
    %332 = tpu.matmul %331, %3, %cst_72 {dimension_numbers = #tpu.dot_dimension_numbers<[1], [0], [0], [1], [0, 0, 1, 1], [], []>} : vector<1x32xf32>, vector<32x8xf32>, vector<1x8xf32> -> vector<1x8xf32>
    %cst_73 = arith.constant 2.000000e-01 : f32
    %333 = vector.broadcast %cst_73 : f32 to vector<1x8xf32>
    %334 = arith.mulf %332, %333 : vector<1x8xf32>
    %335 = math.tanh %334 : vector<1x8xf32>
    %cst_74 = arith.constant 2.500000e+00 : f32
    %336 = vector.broadcast %cst_74 : f32 to vector<1x8xf32>
    %337 = arith.mulf %336, %335 : vector<1x8xf32>
    %cst_75 = arith.constant dense<0xFF800000> : vector<1xf32>
    %338 = vector.multi_reduction <maximumf>, %337, %cst_75 [1] : vector<1x8xf32> to vector<1xf32>
    %339 = vector.shape_cast %338 : vector<1xf32> to vector<1x1xf32>
    %340 = vector.broadcast %339 : vector<1x1xf32> to vector<1x8xf32>
    %341 = arith.subf %337, %340 : vector<1x8xf32>
    %342 = math.exp %341 : vector<1x8xf32>
    %cst_76 = arith.constant dense<0.000000e+00> : vector<1xf32>
    %343 = vector.multi_reduction <add>, %342, %cst_76 [1] : vector<1x8xf32> to vector<1xf32>
    %344 = vector.shape_cast %343 : vector<1xf32> to vector<1x1xf32>
    %345 = tpu.reciprocal %344 {approx = true} : vector<1x1xf32> -> vector<1x1xf32>
    %346 = vector.broadcast %345 : vector<1x1xf32> to vector<1x8xf32>
    %347 = arith.mulf %342, %346 : vector<1x8xf32>
    %348 = vector.broadcast %339 : vector<1x1xf32> to vector<1x8xf32>
    %349 = arith.subf %337, %348 : vector<1x8xf32>
    %350 = math.log %344 : vector<1x1xf32>
    %351 = vector.broadcast %350 : vector<1x1xf32> to vector<1x8xf32>
    %352 = arith.subf %349, %351 : vector<1x8xf32>
    %353 = vector.extract_strided_slice %4 {offsets = [4, 0], sizes = [1, 8], strides = [1, 1]} : vector<8x8xf32> to vector<1x8xf32>
    %354 = arith.addf %337, %353 : vector<1x8xf32>
    %cst_77 = arith.constant dense<0xFF800000> : vector<1xf32>
    %355 = vector.multi_reduction <maximumf>, %354, %cst_77 [1] : vector<1x8xf32> to vector<1xf32>
    %356 = vector.shape_cast %355 : vector<1xf32> to vector<1x1xf32>
    %357 = vector.broadcast %356 : vector<1x1xf32> to vector<1x8xf32>
    %358 = arith.cmpf oeq, %354, %357 : vector<1x8xf32>
    %c8_i32_78 = arith.constant 8 : i32
    %359 = vector.broadcast %c8_i32_78 : i32 to vector<1x8xi32>
    %360 = arith.select %358, %5, %359 : vector<1x8xi1>, vector<1x8xi32>
    %cst_79 = arith.constant dense<2147483647> : vector<1xi32>
    %361 = vector.multi_reduction <minsi>, %360, %cst_79 [1] : vector<1x8xi32> to vector<1xi32>
    %362 = vector.shape_cast %361 : vector<1xi32> to vector<1x1xi32>
    %c4_i32 = arith.constant 4 : i32
    %363 = vector.broadcast %c4_i32 : i32 to vector<1x128xi32>
    %364 = arith.cmpi eq, %7, %363 : vector<1x128xi32>
    %365 = arith.sitofp %362 : vector<1x1xi32> to vector<1x1xf32>
    %366 = vector.shape_cast %365 : vector<1x1xf32> to vector<1x1xf32>
    %367 = vector.broadcast %366 : vector<1x1xf32> to vector<1x128xf32>
    %368 = arith.select %364, %367, %294 : vector<1x128xi1>, vector<1x128xf32>
    %369 = vector.broadcast %362 : vector<1x1xi32> to vector<1x8xi32>
    %370 = arith.cmpi eq, %5, %369 : vector<1x8xi32>
    %371 = arith.extui %370 : vector<1x8xi1> to vector<1x8xi32>
    %372 = arith.sitofp %371 : vector<1x8xi32> to vector<1x8xf32>
    %373 = arith.mulf %352, %372 : vector<1x8xf32>
    %cst_80 = arith.constant dense<0.000000e+00> : vector<1xf32>
    %374 = vector.multi_reduction <add>, %373, %cst_80 [1] : vector<1x8xf32> to vector<1xf32>
    %375 = vector.shape_cast %374 : vector<1xf32> to vector<1x1xf32>
    %376 = arith.subf %302, %375 : vector<1x1xf32>
    %377 = arith.mulf %352, %347 : vector<1x8xf32>
    %cst_81 = arith.constant dense<0.000000e+00> : vector<1xf32>
    %378 = vector.multi_reduction <add>, %377, %cst_81 [1] : vector<1x8xf32> to vector<1xf32>
    %379 = vector.shape_cast %378 : vector<1xf32> to vector<1x1xf32>
    %380 = arith.subf %306, %379 : vector<1x1xf32>
    %c1_i32_82 = arith.constant 1 : i32
    %381 = vector.broadcast %c1_i32_82 : i32 to vector<1x1xi32>
    %382 = arith.addi %362, %381 : vector<1x1xi32>
    %383 = vector.broadcast %382 : vector<1x1xi32> to vector<1x9xi32>
    %384 = arith.cmpi eq, %6, %383 : vector<1x9xi32>
    %385 = arith.extui %384 : vector<1x9xi1> to vector<1x9xi32>
    %386 = arith.sitofp %385 : vector<1x9xi32> to vector<1x9xf32>
    %cst_83 = arith.constant dense<0.000000e+00> : vector<1x128xf32>
    %387 = tpu.matmul %386, %0, %cst_83 {dimension_numbers = #tpu.dot_dimension_numbers<[1], [0], [0], [1], [0, 0, 1, 1], [], []>} : vector<1x9xf32>, vector<9x128xf32>, vector<1x128xf32> -> vector<1x128xf32>
    %cst_84 = arith.constant dense<0.000000e+00> : vector<1x128xf32>
    %388 = tpu.matmul %331, %1, %cst_84 {dimension_numbers = #tpu.dot_dimension_numbers<[1], [0], [0], [1], [0, 0, 1, 1], [], []>} : vector<1x32xf32>, vector<32x128xf32>, vector<1x128xf32> -> vector<1x128xf32>
    %389 = arith.addf %387, %388 : vector<1x128xf32>
    %390 = arith.addf %389, %2 : vector<1x128xf32>
    %391 = arith.negf %390 : vector<1x128xf32>
    %392 = math.exp %391 : vector<1x128xf32>
    %cst_85 = arith.constant 1.000000e+00 : f32
    %393 = vector.broadcast %cst_85 : f32 to vector<1x128xf32>
    %394 = arith.addf %393, %392 : vector<1x128xf32>
    %395 = arith.divf %393, %394 : vector<1x128xf32>
    %396 = math.tanh %390 : vector<1x128xf32>
    %397 = vector.extract_strided_slice %395 {offsets = [0, 0], sizes = [1, 32], strides = [1, 1]} : vector<1x128xf32> to vector<1x32xf32>
    %398 = vector.extract_strided_slice %395 {offsets = [0, 32], sizes = [1, 32], strides = [1, 1]} : vector<1x128xf32> to vector<1x32xf32>
    %399 = vector.extract_strided_slice %396 {offsets = [0, 64], sizes = [1, 32], strides = [1, 1]} : vector<1x128xf32> to vector<1x32xf32>
    %400 = vector.extract_strided_slice %395 {offsets = [0, 96], sizes = [1, 32], strides = [1, 1]} : vector<1x128xf32> to vector<1x32xf32>
    %401 = arith.mulf %398, %329 : vector<1x32xf32>
    %402 = arith.mulf %397, %399 : vector<1x32xf32>
    %403 = arith.addf %401, %402 : vector<1x32xf32>
    %404 = math.tanh %403 : vector<1x32xf32>
    %405 = arith.mulf %400, %404 : vector<1x32xf32>
    %cst_86 = arith.constant dense<0.000000e+00> : vector<1x8xf32>
    %406 = tpu.matmul %405, %3, %cst_86 {dimension_numbers = #tpu.dot_dimension_numbers<[1], [0], [0], [1], [0, 0, 1, 1], [], []>} : vector<1x32xf32>, vector<32x8xf32>, vector<1x8xf32> -> vector<1x8xf32>
    %cst_87 = arith.constant 2.000000e-01 : f32
    %407 = vector.broadcast %cst_87 : f32 to vector<1x8xf32>
    %408 = arith.mulf %406, %407 : vector<1x8xf32>
    %409 = math.tanh %408 : vector<1x8xf32>
    %cst_88 = arith.constant 2.500000e+00 : f32
    %410 = vector.broadcast %cst_88 : f32 to vector<1x8xf32>
    %411 = arith.mulf %410, %409 : vector<1x8xf32>
    %cst_89 = arith.constant dense<0xFF800000> : vector<1xf32>
    %412 = vector.multi_reduction <maximumf>, %411, %cst_89 [1] : vector<1x8xf32> to vector<1xf32>
    %413 = vector.shape_cast %412 : vector<1xf32> to vector<1x1xf32>
    %414 = vector.broadcast %413 : vector<1x1xf32> to vector<1x8xf32>
    %415 = arith.subf %411, %414 : vector<1x8xf32>
    %416 = math.exp %415 : vector<1x8xf32>
    %cst_90 = arith.constant dense<0.000000e+00> : vector<1xf32>
    %417 = vector.multi_reduction <add>, %416, %cst_90 [1] : vector<1x8xf32> to vector<1xf32>
    %418 = vector.shape_cast %417 : vector<1xf32> to vector<1x1xf32>
    %419 = tpu.reciprocal %418 {approx = true} : vector<1x1xf32> -> vector<1x1xf32>
    %420 = vector.broadcast %419 : vector<1x1xf32> to vector<1x8xf32>
    %421 = arith.mulf %416, %420 : vector<1x8xf32>
    %422 = vector.broadcast %413 : vector<1x1xf32> to vector<1x8xf32>
    %423 = arith.subf %411, %422 : vector<1x8xf32>
    %424 = math.log %418 : vector<1x1xf32>
    %425 = vector.broadcast %424 : vector<1x1xf32> to vector<1x8xf32>
    %426 = arith.subf %423, %425 : vector<1x8xf32>
    %427 = vector.extract_strided_slice %4 {offsets = [5, 0], sizes = [1, 8], strides = [1, 1]} : vector<8x8xf32> to vector<1x8xf32>
    %428 = arith.addf %411, %427 : vector<1x8xf32>
    %cst_91 = arith.constant dense<0xFF800000> : vector<1xf32>
    %429 = vector.multi_reduction <maximumf>, %428, %cst_91 [1] : vector<1x8xf32> to vector<1xf32>
    %430 = vector.shape_cast %429 : vector<1xf32> to vector<1x1xf32>
    %431 = vector.broadcast %430 : vector<1x1xf32> to vector<1x8xf32>
    %432 = arith.cmpf oeq, %428, %431 : vector<1x8xf32>
    %c8_i32_92 = arith.constant 8 : i32
    %433 = vector.broadcast %c8_i32_92 : i32 to vector<1x8xi32>
    %434 = arith.select %432, %5, %433 : vector<1x8xi1>, vector<1x8xi32>
    %cst_93 = arith.constant dense<2147483647> : vector<1xi32>
    %435 = vector.multi_reduction <minsi>, %434, %cst_93 [1] : vector<1x8xi32> to vector<1xi32>
    %436 = vector.shape_cast %435 : vector<1xi32> to vector<1x1xi32>
    %c5_i32 = arith.constant 5 : i32
    %437 = vector.broadcast %c5_i32 : i32 to vector<1x128xi32>
    %438 = arith.cmpi eq, %7, %437 : vector<1x128xi32>
    %439 = arith.sitofp %436 : vector<1x1xi32> to vector<1x1xf32>
    %440 = vector.shape_cast %439 : vector<1x1xf32> to vector<1x1xf32>
    %441 = vector.broadcast %440 : vector<1x1xf32> to vector<1x128xf32>
    %442 = arith.select %438, %441, %368 : vector<1x128xi1>, vector<1x128xf32>
    %443 = vector.broadcast %436 : vector<1x1xi32> to vector<1x8xi32>
    %444 = arith.cmpi eq, %5, %443 : vector<1x8xi32>
    %445 = arith.extui %444 : vector<1x8xi1> to vector<1x8xi32>
    %446 = arith.sitofp %445 : vector<1x8xi32> to vector<1x8xf32>
    %447 = arith.mulf %426, %446 : vector<1x8xf32>
    %cst_94 = arith.constant dense<0.000000e+00> : vector<1xf32>
    %448 = vector.multi_reduction <add>, %447, %cst_94 [1] : vector<1x8xf32> to vector<1xf32>
    %449 = vector.shape_cast %448 : vector<1xf32> to vector<1x1xf32>
    %450 = arith.subf %376, %449 : vector<1x1xf32>
    %451 = arith.mulf %426, %421 : vector<1x8xf32>
    %cst_95 = arith.constant dense<0.000000e+00> : vector<1xf32>
    %452 = vector.multi_reduction <add>, %451, %cst_95 [1] : vector<1x8xf32> to vector<1xf32>
    %453 = vector.shape_cast %452 : vector<1xf32> to vector<1x1xf32>
    %454 = arith.subf %380, %453 : vector<1x1xf32>
    %c1_i32_96 = arith.constant 1 : i32
    %455 = vector.broadcast %c1_i32_96 : i32 to vector<1x1xi32>
    %456 = arith.addi %436, %455 : vector<1x1xi32>
    %457 = vector.broadcast %456 : vector<1x1xi32> to vector<1x9xi32>
    %458 = arith.cmpi eq, %6, %457 : vector<1x9xi32>
    %459 = arith.extui %458 : vector<1x9xi1> to vector<1x9xi32>
    %460 = arith.sitofp %459 : vector<1x9xi32> to vector<1x9xf32>
    %cst_97 = arith.constant dense<0.000000e+00> : vector<1x128xf32>
    %461 = tpu.matmul %460, %0, %cst_97 {dimension_numbers = #tpu.dot_dimension_numbers<[1], [0], [0], [1], [0, 0, 1, 1], [], []>} : vector<1x9xf32>, vector<9x128xf32>, vector<1x128xf32> -> vector<1x128xf32>
    %cst_98 = arith.constant dense<0.000000e+00> : vector<1x128xf32>
    %462 = tpu.matmul %405, %1, %cst_98 {dimension_numbers = #tpu.dot_dimension_numbers<[1], [0], [0], [1], [0, 0, 1, 1], [], []>} : vector<1x32xf32>, vector<32x128xf32>, vector<1x128xf32> -> vector<1x128xf32>
    %463 = arith.addf %461, %462 : vector<1x128xf32>
    %464 = arith.addf %463, %2 : vector<1x128xf32>
    %465 = arith.negf %464 : vector<1x128xf32>
    %466 = math.exp %465 : vector<1x128xf32>
    %cst_99 = arith.constant 1.000000e+00 : f32
    %467 = vector.broadcast %cst_99 : f32 to vector<1x128xf32>
    %468 = arith.addf %467, %466 : vector<1x128xf32>
    %469 = arith.divf %467, %468 : vector<1x128xf32>
    %470 = math.tanh %464 : vector<1x128xf32>
    %471 = vector.extract_strided_slice %469 {offsets = [0, 0], sizes = [1, 32], strides = [1, 1]} : vector<1x128xf32> to vector<1x32xf32>
    %472 = vector.extract_strided_slice %469 {offsets = [0, 32], sizes = [1, 32], strides = [1, 1]} : vector<1x128xf32> to vector<1x32xf32>
    %473 = vector.extract_strided_slice %470 {offsets = [0, 64], sizes = [1, 32], strides = [1, 1]} : vector<1x128xf32> to vector<1x32xf32>
    %474 = vector.extract_strided_slice %469 {offsets = [0, 96], sizes = [1, 32], strides = [1, 1]} : vector<1x128xf32> to vector<1x32xf32>
    %475 = arith.mulf %472, %403 : vector<1x32xf32>
    %476 = arith.mulf %471, %473 : vector<1x32xf32>
    %477 = arith.addf %475, %476 : vector<1x32xf32>
    %478 = math.tanh %477 : vector<1x32xf32>
    %479 = arith.mulf %474, %478 : vector<1x32xf32>
    %cst_100 = arith.constant dense<0.000000e+00> : vector<1x8xf32>
    %480 = tpu.matmul %479, %3, %cst_100 {dimension_numbers = #tpu.dot_dimension_numbers<[1], [0], [0], [1], [0, 0, 1, 1], [], []>} : vector<1x32xf32>, vector<32x8xf32>, vector<1x8xf32> -> vector<1x8xf32>
    %cst_101 = arith.constant 2.000000e-01 : f32
    %481 = vector.broadcast %cst_101 : f32 to vector<1x8xf32>
    %482 = arith.mulf %480, %481 : vector<1x8xf32>
    %483 = math.tanh %482 : vector<1x8xf32>
    %cst_102 = arith.constant 2.500000e+00 : f32
    %484 = vector.broadcast %cst_102 : f32 to vector<1x8xf32>
    %485 = arith.mulf %484, %483 : vector<1x8xf32>
    %cst_103 = arith.constant dense<0xFF800000> : vector<1xf32>
    %486 = vector.multi_reduction <maximumf>, %485, %cst_103 [1] : vector<1x8xf32> to vector<1xf32>
    %487 = vector.shape_cast %486 : vector<1xf32> to vector<1x1xf32>
    %488 = vector.broadcast %487 : vector<1x1xf32> to vector<1x8xf32>
    %489 = arith.subf %485, %488 : vector<1x8xf32>
    %490 = math.exp %489 : vector<1x8xf32>
    %cst_104 = arith.constant dense<0.000000e+00> : vector<1xf32>
    %491 = vector.multi_reduction <add>, %490, %cst_104 [1] : vector<1x8xf32> to vector<1xf32>
    %492 = vector.shape_cast %491 : vector<1xf32> to vector<1x1xf32>
    %493 = tpu.reciprocal %492 {approx = true} : vector<1x1xf32> -> vector<1x1xf32>
    %494 = vector.broadcast %493 : vector<1x1xf32> to vector<1x8xf32>
    %495 = arith.mulf %490, %494 : vector<1x8xf32>
    %496 = vector.broadcast %487 : vector<1x1xf32> to vector<1x8xf32>
    %497 = arith.subf %485, %496 : vector<1x8xf32>
    %498 = math.log %492 : vector<1x1xf32>
    %499 = vector.broadcast %498 : vector<1x1xf32> to vector<1x8xf32>
    %500 = arith.subf %497, %499 : vector<1x8xf32>
    %501 = vector.extract_strided_slice %4 {offsets = [6, 0], sizes = [1, 8], strides = [1, 1]} : vector<8x8xf32> to vector<1x8xf32>
    %502 = arith.addf %485, %501 : vector<1x8xf32>
    %cst_105 = arith.constant dense<0xFF800000> : vector<1xf32>
    %503 = vector.multi_reduction <maximumf>, %502, %cst_105 [1] : vector<1x8xf32> to vector<1xf32>
    %504 = vector.shape_cast %503 : vector<1xf32> to vector<1x1xf32>
    %505 = vector.broadcast %504 : vector<1x1xf32> to vector<1x8xf32>
    %506 = arith.cmpf oeq, %502, %505 : vector<1x8xf32>
    %c8_i32_106 = arith.constant 8 : i32
    %507 = vector.broadcast %c8_i32_106 : i32 to vector<1x8xi32>
    %508 = arith.select %506, %5, %507 : vector<1x8xi1>, vector<1x8xi32>
    %cst_107 = arith.constant dense<2147483647> : vector<1xi32>
    %509 = vector.multi_reduction <minsi>, %508, %cst_107 [1] : vector<1x8xi32> to vector<1xi32>
    %510 = vector.shape_cast %509 : vector<1xi32> to vector<1x1xi32>
    %c6_i32 = arith.constant 6 : i32
    %511 = vector.broadcast %c6_i32 : i32 to vector<1x128xi32>
    %512 = arith.cmpi eq, %7, %511 : vector<1x128xi32>
    %513 = arith.sitofp %510 : vector<1x1xi32> to vector<1x1xf32>
    %514 = vector.shape_cast %513 : vector<1x1xf32> to vector<1x1xf32>
    %515 = vector.broadcast %514 : vector<1x1xf32> to vector<1x128xf32>
    %516 = arith.select %512, %515, %442 : vector<1x128xi1>, vector<1x128xf32>
    %517 = vector.broadcast %510 : vector<1x1xi32> to vector<1x8xi32>
    %518 = arith.cmpi eq, %5, %517 : vector<1x8xi32>
    %519 = arith.extui %518 : vector<1x8xi1> to vector<1x8xi32>
    %520 = arith.sitofp %519 : vector<1x8xi32> to vector<1x8xf32>
    %521 = arith.mulf %500, %520 : vector<1x8xf32>
    %cst_108 = arith.constant dense<0.000000e+00> : vector<1xf32>
    %522 = vector.multi_reduction <add>, %521, %cst_108 [1] : vector<1x8xf32> to vector<1xf32>
    %523 = vector.shape_cast %522 : vector<1xf32> to vector<1x1xf32>
    %524 = arith.subf %450, %523 : vector<1x1xf32>
    %525 = arith.mulf %500, %495 : vector<1x8xf32>
    %cst_109 = arith.constant dense<0.000000e+00> : vector<1xf32>
    %526 = vector.multi_reduction <add>, %525, %cst_109 [1] : vector<1x8xf32> to vector<1xf32>
    %527 = vector.shape_cast %526 : vector<1xf32> to vector<1x1xf32>
    %528 = arith.subf %454, %527 : vector<1x1xf32>
    %c1_i32_110 = arith.constant 1 : i32
    %529 = vector.broadcast %c1_i32_110 : i32 to vector<1x1xi32>
    %530 = arith.addi %510, %529 : vector<1x1xi32>
    %531 = vector.broadcast %530 : vector<1x1xi32> to vector<1x9xi32>
    %532 = arith.cmpi eq, %6, %531 : vector<1x9xi32>
    %533 = arith.extui %532 : vector<1x9xi1> to vector<1x9xi32>
    %534 = arith.sitofp %533 : vector<1x9xi32> to vector<1x9xf32>
    %cst_111 = arith.constant dense<0.000000e+00> : vector<1x128xf32>
    %535 = tpu.matmul %534, %0, %cst_111 {dimension_numbers = #tpu.dot_dimension_numbers<[1], [0], [0], [1], [0, 0, 1, 1], [], []>} : vector<1x9xf32>, vector<9x128xf32>, vector<1x128xf32> -> vector<1x128xf32>
    %cst_112 = arith.constant dense<0.000000e+00> : vector<1x128xf32>
    %536 = tpu.matmul %479, %1, %cst_112 {dimension_numbers = #tpu.dot_dimension_numbers<[1], [0], [0], [1], [0, 0, 1, 1], [], []>} : vector<1x32xf32>, vector<32x128xf32>, vector<1x128xf32> -> vector<1x128xf32>
    %537 = arith.addf %535, %536 : vector<1x128xf32>
    %538 = arith.addf %537, %2 : vector<1x128xf32>
    %539 = arith.negf %538 : vector<1x128xf32>
    %540 = math.exp %539 : vector<1x128xf32>
    %cst_113 = arith.constant 1.000000e+00 : f32
    %541 = vector.broadcast %cst_113 : f32 to vector<1x128xf32>
    %542 = arith.addf %541, %540 : vector<1x128xf32>
    %543 = arith.divf %541, %542 : vector<1x128xf32>
    %544 = math.tanh %538 : vector<1x128xf32>
    %545 = vector.extract_strided_slice %543 {offsets = [0, 0], sizes = [1, 32], strides = [1, 1]} : vector<1x128xf32> to vector<1x32xf32>
    %546 = vector.extract_strided_slice %543 {offsets = [0, 32], sizes = [1, 32], strides = [1, 1]} : vector<1x128xf32> to vector<1x32xf32>
    %547 = vector.extract_strided_slice %544 {offsets = [0, 64], sizes = [1, 32], strides = [1, 1]} : vector<1x128xf32> to vector<1x32xf32>
    %548 = vector.extract_strided_slice %543 {offsets = [0, 96], sizes = [1, 32], strides = [1, 1]} : vector<1x128xf32> to vector<1x32xf32>
    %549 = arith.mulf %546, %477 : vector<1x32xf32>
    %550 = arith.mulf %545, %547 : vector<1x32xf32>
    %551 = arith.addf %549, %550 : vector<1x32xf32>
    %552 = math.tanh %551 : vector<1x32xf32>
    %553 = arith.mulf %548, %552 : vector<1x32xf32>
    %cst_114 = arith.constant dense<0.000000e+00> : vector<1x8xf32>
    %554 = tpu.matmul %553, %3, %cst_114 {dimension_numbers = #tpu.dot_dimension_numbers<[1], [0], [0], [1], [0, 0, 1, 1], [], []>} : vector<1x32xf32>, vector<32x8xf32>, vector<1x8xf32> -> vector<1x8xf32>
    %cst_115 = arith.constant 2.000000e-01 : f32
    %555 = vector.broadcast %cst_115 : f32 to vector<1x8xf32>
    %556 = arith.mulf %554, %555 : vector<1x8xf32>
    %557 = math.tanh %556 : vector<1x8xf32>
    %cst_116 = arith.constant 2.500000e+00 : f32
    %558 = vector.broadcast %cst_116 : f32 to vector<1x8xf32>
    %559 = arith.mulf %558, %557 : vector<1x8xf32>
    %cst_117 = arith.constant dense<0xFF800000> : vector<1xf32>
    %560 = vector.multi_reduction <maximumf>, %559, %cst_117 [1] : vector<1x8xf32> to vector<1xf32>
    %561 = vector.shape_cast %560 : vector<1xf32> to vector<1x1xf32>
    %562 = vector.broadcast %561 : vector<1x1xf32> to vector<1x8xf32>
    %563 = arith.subf %559, %562 : vector<1x8xf32>
    %564 = math.exp %563 : vector<1x8xf32>
    %cst_118 = arith.constant dense<0.000000e+00> : vector<1xf32>
    %565 = vector.multi_reduction <add>, %564, %cst_118 [1] : vector<1x8xf32> to vector<1xf32>
    %566 = vector.shape_cast %565 : vector<1xf32> to vector<1x1xf32>
    %567 = tpu.reciprocal %566 {approx = true} : vector<1x1xf32> -> vector<1x1xf32>
    %568 = vector.broadcast %567 : vector<1x1xf32> to vector<1x8xf32>
    %569 = arith.mulf %564, %568 : vector<1x8xf32>
    %570 = vector.broadcast %561 : vector<1x1xf32> to vector<1x8xf32>
    %571 = arith.subf %559, %570 : vector<1x8xf32>
    %572 = math.log %566 : vector<1x1xf32>
    %573 = vector.broadcast %572 : vector<1x1xf32> to vector<1x8xf32>
    %574 = arith.subf %571, %573 : vector<1x8xf32>
    %575 = vector.extract_strided_slice %4 {offsets = [7, 0], sizes = [1, 8], strides = [1, 1]} : vector<8x8xf32> to vector<1x8xf32>
    %576 = arith.addf %559, %575 : vector<1x8xf32>
    %cst_119 = arith.constant dense<0xFF800000> : vector<1xf32>
    %577 = vector.multi_reduction <maximumf>, %576, %cst_119 [1] : vector<1x8xf32> to vector<1xf32>
    %578 = vector.shape_cast %577 : vector<1xf32> to vector<1x1xf32>
    %579 = vector.broadcast %578 : vector<1x1xf32> to vector<1x8xf32>
    %580 = arith.cmpf oeq, %576, %579 : vector<1x8xf32>
    %c8_i32_120 = arith.constant 8 : i32
    %581 = vector.broadcast %c8_i32_120 : i32 to vector<1x8xi32>
    %582 = arith.select %580, %5, %581 : vector<1x8xi1>, vector<1x8xi32>
    %cst_121 = arith.constant dense<2147483647> : vector<1xi32>
    %583 = vector.multi_reduction <minsi>, %582, %cst_121 [1] : vector<1x8xi32> to vector<1xi32>
    %584 = vector.shape_cast %583 : vector<1xi32> to vector<1x1xi32>
    %c7_i32 = arith.constant 7 : i32
    %585 = vector.broadcast %c7_i32 : i32 to vector<1x128xi32>
    %586 = arith.cmpi eq, %7, %585 : vector<1x128xi32>
    %587 = arith.sitofp %584 : vector<1x1xi32> to vector<1x1xf32>
    %588 = vector.shape_cast %587 : vector<1x1xf32> to vector<1x1xf32>
    %589 = vector.broadcast %588 : vector<1x1xf32> to vector<1x128xf32>
    %590 = arith.select %586, %589, %516 : vector<1x128xi1>, vector<1x128xf32>
    %591 = vector.broadcast %584 : vector<1x1xi32> to vector<1x8xi32>
    %592 = arith.cmpi eq, %5, %591 : vector<1x8xi32>
    %593 = arith.extui %592 : vector<1x8xi1> to vector<1x8xi32>
    %594 = arith.sitofp %593 : vector<1x8xi32> to vector<1x8xf32>
    %595 = arith.mulf %574, %594 : vector<1x8xf32>
    %cst_122 = arith.constant dense<0.000000e+00> : vector<1xf32>
    %596 = vector.multi_reduction <add>, %595, %cst_122 [1] : vector<1x8xf32> to vector<1xf32>
    %597 = vector.shape_cast %596 : vector<1xf32> to vector<1x1xf32>
    %598 = arith.subf %524, %597 : vector<1x1xf32>
    %599 = arith.mulf %574, %569 : vector<1x8xf32>
    %cst_123 = arith.constant dense<0.000000e+00> : vector<1xf32>
    %600 = vector.multi_reduction <add>, %599, %cst_123 [1] : vector<1x8xf32> to vector<1xf32>
    %601 = vector.shape_cast %600 : vector<1xf32> to vector<1x1xf32>
    %602 = arith.subf %528, %601 : vector<1x1xf32>
    %c126_i32 = arith.constant 126 : i32
    %603 = vector.broadcast %c126_i32 : i32 to vector<1x128xi32>
    %604 = arith.cmpi eq, %7, %603 : vector<1x128xi32>
    %605 = vector.shape_cast %598 : vector<1x1xf32> to vector<1x1xf32>
    %606 = vector.broadcast %605 : vector<1x1xf32> to vector<1x128xf32>
    %607 = arith.select %604, %606, %590 : vector<1x128xi1>, vector<1x128xf32>
    %c127_i32 = arith.constant 127 : i32
    %608 = vector.broadcast %c127_i32 : i32 to vector<1x128xi32>
    %609 = arith.cmpi eq, %7, %608 : vector<1x128xi32>
    %610 = vector.shape_cast %602 : vector<1x1xf32> to vector<1x1xf32>
    %611 = vector.broadcast %610 : vector<1x1xf32> to vector<1x128xf32>
    %612 = arith.select %609, %611, %607 : vector<1x128xi1>, vector<1x128xf32>
    %c0_124 = arith.constant 0 : index
    %c0_125 = arith.constant 0 : index
    %613 = vector.load %arg5[%c0_124, %c0_125] : memref<1x128xf32, #tpu.memory_space<vmem>>, vector<1x128xf32>
    tpu.vector_store %arg5[%c0_124, %c0_125], %612 {strides = array<i32>} : memref<1x128xf32, #tpu.memory_space<vmem>>, vector<1x128xf32>,
    return
  }
}

</mosaic_0001>

<llo_original>
// kernel: tpu_custom_call.1
$region0: #{tpu_custom_call.1}
  #allocation0 [shape = 'u32[]', space=smem, size = 0x4, offset = 0x4, fixed_abs, tag = 'smem constant byte address 0x4 - core index']
  #allocation1 [shape = 'u32[72,128]{1,0:T(1,128)}', space=vmem, size = 0x9000, scoped, tag = 'internal scratch']
  %s0 = inlined_call_operand.vmem [shape: f32[8,8], index: 0, kind: input, shape index: {}]
  %s1 = inlined_call_operand.hbm [shape: f32[9,128], index: 1, kind: input, shape index: {}]
  %s2 = inlined_call_operand.vmem [shape: f32[32,128], index: 2, kind: input, shape index: {}]
  %s3 = inlined_call_operand.vmem [shape: f32[1,128], index: 3, kind: input, shape index: {}]
  %s4 = inlined_call_operand.vmem [shape: f32[32,8], index: 4, kind: input, shape index: {}]
  %s5 = inlined_call_operand.hbm [shape: f32[1,128], index: 5, kind: output, shape index: {}]
  %s6 = sld [smem:[#allocation0]]
  $region34: #{tpu_custom_call.1} parent=0
    _
  %s8 = ssub.s32 1, %s6
  %s9 = scalar_select 0, %s8, %s6
  $region1: #{tpu_custom_call.1} parent=0
    #allocation2 [shape = 'u8[8192]{0}', space=vmem, size = 0x2000, scoped, tag = 'input window, operand 1, single buffered']
    #allocation3 [shape = 's32[1]{0}', space=sflag, size = 0x4, scoped, tag = 'scoped memory for tpu_custom_call.1']
    #allocation4 [shape = 's32[1]{0}', space=sflag, size = 0x4, scoped, tag = 'scoped memory for tpu_custom_call.1']
    #allocation5 [shape = 'u8[512]{0}', space=vmem, size = 0x400, scoped, tag = 'output window, operand 0, single buffered']
    %10 = vsyncpa [#allocation3], 0
    %11 = vsyncpa [#allocation4], 0
    // Predicated region
    $region2: #{tpu_custom_call.1} parent=1 // pred_check
      _
    $region3: #{tpu_custom_call.1} parent=1 // pred_check_branch
      %13 = sbr.rel (0) target = $region5
    $region4: #{tpu_custom_call.1} parent=1 // pred_region
      _
    $region5: #{tpu_custom_call.1} parent=1 // pred_fallthru
      _
    // Predicated region
    $region6: #{tpu_custom_call.1} parent=1 // pred_check
      _
    $region7: #{tpu_custom_call.1} parent=1 // pred_check_branch
      %15 = sbr.rel (0) target = $region9
    $region8: #{tpu_custom_call.1} parent=1 // pred_region
      %17 = vsyncadd [#allocation3], 0
      %s18 = sshll.u32 %s1, 4
      %s19 = int_to_ptr.hbm [resolvable:$true] %s18
      %s20 = sshll.u32 [#allocation2], 4
      %s21 = int_to_ptr.vmem [resolvable:$true] %s20
      %26 = dma.hbm_to_vmem [thread:$0]  %s19, 256, %s21, [#allocation3], 128, 128, 8
    $region9: #{tpu_custom_call.1} parent=1 // pred_fallthru
      _
    // Predicated region
    $region10: #{tpu_custom_call.1} parent=1 // pred_check
      _
    $region11: #{tpu_custom_call.1} parent=1 // pred_check_branch
      %28 = sbr.rel (0) target = $region13
    $region12: #{tpu_custom_call.1} parent=1 // pred_region
      _
    $region13: #{tpu_custom_call.1} parent=1 // pred_fallthru
      _
    // Predicated region
    $region14: #{tpu_custom_call.1} parent=1 // pred_check
      _
    $region15: #{tpu_custom_call.1} parent=1 // pred_check_branch
      %30 = sbr.rel (0) target = $region17
    $region16: #{tpu_custom_call.1} parent=1 // pred_region
      _
    $region17: #{tpu_custom_call.1} parent=1 // pred_fallthru
      _
    // Predicated region
    $region18: #{tpu_custom_call.1} parent=1 // pred_check
      _
    $region19: #{tpu_custom_call.1} parent=1 // pred_check_branch
      %32 = sbr.rel (0) target = $region21
    $region20: #{tpu_custom_call.1} parent=1 // pred_region
      _
    $region21: #{tpu_custom_call.1} parent=1 // pred_fallthru
      _
    // Predicated region
    $region22: #{tpu_custom_call.1} parent=1 // pred_check
      _
    $region23: #{tpu_custom_call.1} parent=1 // pred_check_branch
      %34 = sbr.rel (0) target = $region25
    $region24: #{tpu_custom_call.1} parent=1 // pred_region
      %36 = dma.done [#allocation3], 256
    $region25: #{tpu_custom_call.1} parent=1 // pred_fallthru
      _
    %v37 = vld [vmem:[#allocation2] sm:$0xff]
    %v38 = vld [vmem:[#allocation2 + $0x8] sm:$0x1]
    %v39 = vld [vmem:[%s2] sm:$0xff]
    %v40 = vld [vmem:[%s2 + $0x8] sm:$0xff]
    %v41 = vld [vmem:[%s2 + $0x10] sm:$0xff]
    %v42 = vld [vmem:[%s2 + $0x18] sm:$0xff]
    %v43 = vld [vmem:[%s3] sm:$0x1]
    %v44 = vld [vmem:[%s4] sm:$0xff]
    %v45 = vld [vmem:[%s4 + $0x8] sm:$0xff]
    %v46 = vld [vmem:[%s4 + $0x10] sm:$0xff]
    %v47 = vld [vmem:[%s4 + $0x18] sm:$0xff]
    %v48 = vld [vmem:[%s0] sm:$0xff]
    %v49 = vlaneseq
    %v50 = vand.u32 %v49, 127
    %vm51 = vcmp.eq.s32.totalorder %v50, 0
    %v52 = vsel %vm51, 1, 0
    %v53 = vcvt.s32.f32 %v52
    %vm54 = vcmask 261120
    %v56 = vsel %vm54, 0.0, 0
    %58 = vmatpush.msra.mxu0 0.0
    %59 = vmatpush.msra.mxu0 0.0
    %60 = vmatpush.msra.mxu0 0.0
    %61 = vmatpush.msra.mxu0 0.0
    %62 = vmatpush.msra.mxu0 0.0
    %63 = vmatpush.msra.mxu0 0.0
    %64 = vmatpush.msra.mxu0 0.0
    %65 = vmatpush.msra.mxu0 0.0
    %66 = vmatpush.msra.mxu0 0.0
    %67 = vmatpush.msra.mxu0 0.0
    %68 = vmatpush.msra.mxu0 0.0
    %69 = vmatpush.msra.mxu0 0.0
    %70 = vmatpush.msra.mxu0 %v42
    %71 = vmatpush.msra.mxu0 %v41
    %72 = vmatpush.msra.mxu0 %v40
    %73 = vmatpush.msra.mxu0 %v39
    %74 = vmatmul.f32.gmra.mxu0 %v56
    %v75 = vpop.f32.mrf.mxu0
    %v76 = vadd.f32 0.0, %v75
    %77 = vdwg.mxu0
    %vm78 = vcmask 72704
    %v80 = vsel %vm78, %v53, 0
    %vm82 = vcmask 1040384
    %v84 = vsel %vm82, %v38, 0
    %86 = vmatpush.msra.mxu0 0.0
    %87 = vmatpush.msra.mxu0 0.0
    %88 = vmatpush.msra.mxu0 0.0
    %89 = vmatpush.msra.mxu0 0.0
    %90 = vmatpush.msra.mxu0 0.0
    %91 = vmatpush.msra.mxu0 0.0
    %92 = vmatpush.msra.mxu0 0.0
    %93 = vmatpush.msra.mxu0 0.0
    %94 = vmatpush.msra.mxu0 0.0
    %95 = vmatpush.msra.mxu0 0.0
    %96 = vmatpush.msra.mxu0 0.0
    %97 = vmatpush.msra.mxu0 0.0
    %98 = vmatpush.msra.mxu0 0.0
    %99 = vmatpush.msra.mxu0 0.0
    %100 = vmatpush.msra.mxu0 %v84
    %101 = vmatpush.msra.mxu0 %v37
    %102 = vmatmul.f32.gmra.mxu0 %v80
    %v103 = vpop.f32.mrf.mxu0
    %v104 = vadd.f32 %v76, %v103
    %105 = vdwg.mxu0
    %v106 = vadd.f32 %v104, %v43
    %v107 = vxor.u32 %v106, 2147483648
    %v108 = vmul.f32 %v107, 1.442695
    %v109 = vpow.pop %v108
    %v110 = vadd.f32 %v109, 1.0
    %v111 = vrcp.pop %v110
    %v112 = vmul.f32 %v110, %v111
    %v113 = vsub.f32 1.0, %v112
    %v114 = vmul.f32 %v111, %v113
    %v115 = vadd.f32 %v111, %v114
    %vm116 = vweird.f32 %v110
    %vm117 = vweird.f32 %v111
    %vm118 = vmor %vm116, %vm117
    %v119 = vsel %vm118, %v111, %v115
    %v120 = vand.u32 2147483647, %v110
    %vm121 = vcmp.eq.f32.partialorder %v120, 8.507059e+37
    %v122 = vand.u32 %v110, 2147483648
    %v123 = vor.u32 1.1754944e-38, %v122
    %v124 = vsel %vm121, %v123, %v119
    %v125 = vmul.f32 1.0, %v124
    %v126 = vtanh.pop %v106
    %v127 = vmul.f32 %v125, 0.0
    %129 = vrot.lane.b32.xlu0 %v126, 64
    %v130 = vpop.permute.xlu0 %129
    %v132 = vmul.f32 %v125, %v130
    %134 = vrot.lane.b32.xlu0 %v132, 32
    %v135 = vpop.permute.xlu0 %134
    %v137 = vadd.f32 %v127, %v135
    %v138 = vtanh.pop %v137
    %140 = vrot.lane.b32.xlu0 %v138, 64
    %v141 = vpop.permute.xlu0 %140
    %v143 = vmul.f32 %v125, %v141
    %145 = vrot.lane.b32.xlu0 %v143, 32
    %v146 = vpop.permute.xlu0 %145
    %v147 = vsel %vm54, %v146, 0
    %149 = vmatpush.msra.mxu0 0.0
    %150 = vmatpush.msra.mxu0 0.0
    %151 = vmatpush.msra.mxu0 0.0
    %152 = vmatpush.msra.mxu0 0.0
    %153 = vmatpush.msra.mxu0 0.0
    %154 = vmatpush.msra.mxu0 0.0
    %155 = vmatpush.msra.mxu0 0.0
    %156 = vmatpush.msra.mxu0 0.0
    %157 = vmatpush.msra.mxu0 0.0
    %158 = vmatpush.msra.mxu0 0.0
    %159 = vmatpush.msra.mxu0 0.0
    %160 = vmatpush.msra.mxu0 0.0
    %161 = vmatpush.msra.mxu0 %v47
    %162 = vmatpush.msra.mxu0 %v46
    %163 = vmatpush.msra.mxu0 %v45
    %164 = vmatpush.msra.mxu0 %v44
    %165 = vmatmul.f32.gmra.mxu0 %v147
    %v166 = vpop.f32.mrf.mxu0
    %v167 = vadd.f32 0.0, %v166
    %168 = vdwg.mxu0
    %v169 = vmul.f32 %v167, 0.2
    %v170 = vtanh.pop %v169
    %v171 = vmul.f32 %v170, 2.5
    %vm172 = vcmask 57344
    %v173 = vsel %vm172, %v171, -inf
    %174 = vmax.xlane.f32.xlu0 %v173
    %v175 = vpop.xlane.xlu0 %174
    %v176 = vsub.f32 %v171, %v175
    %v177 = vmul.f32 %v176, 1.442695
    %v178 = vpow.pop %v177
    %v179 = vsel %vm172, %v178, 0.0
    %180 = vadd.xlane.f32.xlu0 %v179
    %v181 = vpop.xlane.xlu0 %180
    %v182 = vrcp.pop %v181
    %v183 = vmul.f32 %v178, %v182
    %v184 = vlog2.pop %v181
    %v185 = vmul.f32 %v184, 0.6931472
    %v186 = vsub.f32 %v176, %v185
    %v187 = vadd.f32 %v171, %v48
    %v188 = vsel %vm172, %v187, -inf
    %189 = vmax.xlane.f32.xlu0 %v188
    %v190 = vpop.xlane.xlu0 %189
    %vm191 = vcmp.eq.f32.partialorder %v187, %v190
    %v192 = vsel %vm191, %v50, 8
    %v193 = vsel %vm172, %v192, 2147483647
    %v194 = vand.u32 %v193, 65535
    %v195 = vshra.s32 %v193, 16
    %v196 = vcvt.s32.f32 %v194
    %v197 = vcvt.s32.f32 %v195
    %198 = vmin.xlane.f32.xlu0 %v197
    %v199 = vpop.xlane.xlu0 %198
    %vm200 = vcmp.eq.f32.partialorder %v197, %v199
    %v201 = vsel %vm200, %v196, inf
    %202 = vmin.xlane.f32.xlu0 %v201
    %v203 = vpop.xlane.xlu0 %202
    %v204 = vcvt.f32.s32 %v203
    %v205 = vcvt.f32.s32 %v199
    %v206 = vshll.u32 %v205, 16
    %v207 = vadd.s32 %v206, %v204
    %v208 = vcvt.s32.f32 %v207
    %v209 = vsel %vm51, %v208, 0.0
    %vm210 = vcmp.eq.s32.totalorder %v50, %v207
    %v211 = vsel %vm210, 1, 0
    %v212 = vcvt.s32.f32 %v211
    %v213 = vmul.f32 %v186, %v212
    %v214 = vsel %vm172, %v213, 0.0
    %215 = vadd.xlane.f32.xlu0 %v214
    %v216 = vpop.xlane.xlu0 %215
    %v217 = vsub.f32 0.0, %v216
    %v218 = vmul.f32 %v186, %v183
    %v219 = vsel %vm172, %v218, 0.0
    %220 = vadd.xlane.f32.xlu0 %v219
    %v221 = vpop.xlane.xlu0 %220
    %v222 = vsub.f32 0.0, %v221
    %v223 = vadd.s32 %v207, 1
    %vm224 = vcmp.eq.s32.totalorder %v50, %v223
    %v225 = vsel %vm224, 1, 0
    %v226 = vcvt.s32.f32 %v225
    %227 = vmatpush.msra.mxu0 0.0
    %228 = vmatpush.msra.mxu0 0.0
    %229 = vmatpush.msra.mxu0 0.0
    %230 = vmatpush.msra.mxu0 0.0
    %231 = vmatpush.msra.mxu0 0.0
    %232 = vmatpush.msra.mxu0 0.0
    %233 = vmatpush.msra.mxu0 0.0
    %234 = vmatpush.msra.mxu0 0.0
    %235 = vmatpush.msra.mxu0 0.0
    %236 = vmatpush.msra.mxu0 0.0
    %237 = vmatpush.msra.mxu0 0.0
    %238 = vmatpush.msra.mxu0 0.0
    %239 = vmatpush.msra.mxu0 %v42
    %240 = vmatpush.msra.mxu0 %v41
    %241 = vmatpush.msra.mxu0 %v40
    %242 = vmatpush.msra.mxu0 %v39
    %243 = vmatmul.f32.gmra.mxu0 %v147
    %v244 = vpop.f32.mrf.mxu0
    %v245 = vadd.f32 0.0, %v244
    %246 = vdwg.mxu0
    %v248 = vsel %vm78, %v226, 0
    %250 = vmatpush.msra.mxu0 0.0
    %251 = vmatpush.msra.mxu0 0.0
    %252 = vmatpush.msra.mxu0 0.0
    %253 = vmatpush.msra.mxu0 0.0
    %254 = vmatpush.msra.mxu0 0.0
    %255 = vmatpush.msra.mxu0 0.0
    %256 = vmatpush.msra.mxu0 0.0
    %257 = vmatpush.msra.mxu0 0.0
    %258 = vmatpush.msra.mxu0 0.0
    %259 = vmatpush.msra.mxu0 0.0
    %260 = vmatpush.msra.mxu0 0.0
    %261 = vmatpush.msra.mxu0 0.0
    %262 = vmatpush.msra.mxu0 0.0
    %263 = vmatpush.msra.mxu0 0.0
    %264 = vmatpush.msra.mxu0 %v84
    %265 = vmatpush.msra.mxu0 %v37
    %266 = vmatmul.f32.gmra.mxu0 %v248
    %v267 = vpop.f32.mrf.mxu0
    %v268 = vadd.f32 %v245, %v267
    %269 = vdwg.mxu0
    %v270 = vadd.f32 %v268, %v43
    %v271 = vxor.u32 %v270, 2147483648
    %v272 = vmul.f32 %v271, 1.442695
    %v273 = vpow.pop %v272
    %v274 = vadd.f32 %v273, 1.0
    %v275 = vrcp.pop %v274
    %v276 = vmul.f32 %v274, %v275
    %v277 = vsub.f32 1.0, %v276
    %v278 = vmul.f32 %v275, %v277
    %v279 = vadd.f32 %v275, %v278
    %vm280 = vweird.f32 %v274
    %vm281 = vweird.f32 %v275
    %vm282 = vmor %vm280, %vm281
    %v283 = vsel %vm282, %v275, %v279
    %v284 = vand.u32 2147483647, %v274
    %vm285 = vcmp.eq.f32.partialorder %v284, 8.507059e+37
    %v286 = vand.u32 %v274, 2147483648
    %v287 = vor.u32 1.1754944e-38, %v286
    %v288 = vsel %vm285, %v287, %v283
    %v289 = vmul.f32 1.0, %v288
    %v290 = vtanh.pop %v270
    %v291 = vmul.f32 %v289, %v137
    %293 = vrot.lane.b32.xlu0 %v290, 64
    %v294 = vpop.permute.xlu0 %293
    %v296 = vmul.f32 %v289, %v294
    %298 = vrot.lane.b32.xlu0 %v296, 32
    %v299 = vpop.permute.xlu0 %298
    %v301 = vadd.f32 %v291, %v299
    %v302 = vtanh.pop %v301
    %304 = vrot.lane.b32.xlu0 %v302, 64
    %v305 = vpop.permute.xlu0 %304
    %v307 = vmul.f32 %v289, %v305
    %309 = vrot.lane.b32.xlu0 %v307, 32
    %v310 = vpop.permute.xlu0 %309
    %v311 = vsel %vm54, %v310, 0
    %313 = vmatpush.msra.mxu0 0.0
    %314 = vmatpush.msra.mxu0 0.0
    %315 = vmatpush.msra.mxu0 0.0
    %316 = vmatpush.msra.mxu0 0.0
    %317 = vmatpush.msra.mxu0 0.0
    %318 = vmatpush.msra.mxu0 0.0
    %319 = vmatpush.msra.mxu0 0.0
    %320 = vmatpush.msra.mxu0 0.0
    %321 = vmatpush.msra.mxu0 0.0
    %322 = vmatpush.msra.mxu0 0.0
    %323 = vmatpush.msra.mxu0 0.0
    %324 = vmatpush.msra.mxu0 0.0
    %325 = vmatpush.msra.mxu0 %v47
    %326 = vmatpush.msra.mxu0 %v46
    %327 = vmatpush.msra.mxu0 %v45
    %328 = vmatpush.msra.mxu0 %v44
    %329 = vmatmul.f32.gmra.mxu0 %v311
    %v330 = vpop.f32.mrf.mxu0
    %v331 = vadd.f32 0.0, %v330
    %332 = vdwg.mxu0
    %v333 = vmul.f32 %v331, 0.2
    %v334 = vtanh.pop %v333
    %v335 = vmul.f32 %v334, 2.5
    %v336 = vsel %vm172, %v335, -inf
    %337 = vmax.xlane.f32.xlu0 %v336
    %v338 = vpop.xlane.xlu0 %337
    %v339 = vsub.f32 %v335, %v338
    %v340 = vmul.f32 %v339, 1.442695
    %v341 = vpow.pop %v340
    %v342 = vsel %vm172, %v341, 0.0
    %343 = vadd.xlane.f32.xlu0 %v342
    %v344 = vpop.xlane.xlu0 %343
    %v345 = vrcp.pop %v344
    %v346 = vmul.f32 %v341, %v345
    %v347 = vlog2.pop %v344
    %v348 = vmul.f32 %v347, 0.6931472
    %v349 = vsub.f32 %v339, %v348
    %v351 = vrot.slane %v48, 1
    %v353 = vadd.f32 %v335, %v351
    %v354 = vsel %vm172, %v353, -inf
    %355 = vmax.xlane.f32.xlu0 %v354
    %v356 = vpop.xlane.xlu0 %355
    %vm357 = vcmp.eq.f32.partialorder %v353, %v356
    %v358 = vsel %vm357, %v50, 8
    %v359 = vsel %vm172, %v358, 2147483647
    %v360 = vand.u32 %v359, 65535
    %v361 = vshra.s32 %v359, 16
    %v362 = vcvt.s32.f32 %v360
    %v363 = vcvt.s32.f32 %v361
    %364 = vmin.xlane.f32.xlu0 %v363
    %v365 = vpop.xlane.xlu0 %364
    %vm366 = vcmp.eq.f32.partialorder %v363, %v365
    %v367 = vsel %vm366, %v362, inf
    %368 = vmin.xlane.f32.xlu0 %v367
    %v369 = vpop.xlane.xlu0 %368
    %v370 = vcvt.f32.s32 %v369
    %v371 = vcvt.f32.s32 %v365
    %v372 = vshll.u32 %v371, 16
    %v373 = vadd.s32 %v372, %v370
    %vm374 = vcmp.eq.s32.totalorder %v50, 1
    %v375 = vcvt.s32.f32 %v373
    %v376 = vsel %vm374, %v375, %v209
    %vm377 = vcmp.eq.s32.totalorder %v50, %v373
    %v378 = vsel %vm377, 1, 0
    %v379 = vcvt.s32.f32 %v378
    %v380 = vmul.f32 %v349, %v379
    %v381 = vsel %vm172, %v380, 0.0
    %382 = vadd.xlane.f32.xlu0 %v381
    %v383 = vpop.xlane.xlu0 %382
    %v384 = vsub.f32 %v217, %v383
    %v385 = vmul.f32 %v349, %v346
    %v386 = vsel %vm172, %v385, 0.0
    %387 = vadd.xlane.f32.xlu0 %v386
    %v388 = vpop.xlane.xlu0 %387
    %v389 = vsub.f32 %v222, %v388
    %v390 = vadd.s32 %v373, 1
    %vm391 = vcmp.eq.s32.totalorder %v50, %v390
    %v392 = vsel %vm391, 1, 0
    %v393 = vcvt.s32.f32 %v392
    %394 = vmatpush.msra.mxu0 0.0
    %395 = vmatpush.msra.mxu0 0.0
    %396 = vmatpush.msra.mxu0 0.0
    %397 = vmatpush.msra.mxu0 0.0
    %398 = vmatpush.msra.mxu0 0.0
    %399 = vmatpush.msra.mxu0 0.0
    %400 = vmatpush.msra.mxu0 0.0
    %401 = vmatpush.msra.mxu0 0.0
    %402 = vmatpush.msra.mxu0 0.0
    %403 = vmatpush.msra.mxu0 0.0
    %404 = vmatpush.msra.mxu0 0.0
    %405 = vmatpush.msra.mxu0 0.0
    %406 = vmatpush.msra.mxu0 %v42
    %407 = vmatpush.msra.mxu0 %v41
    %408 = vmatpush.msra.mxu0 %v40
    %409 = vmatpush.msra.mxu0 %v39
    %410 = vmatmul.f32.gmra.mxu0 %v311
    %v411 = vpop.f32.mrf.mxu0
    %v412 = vadd.f32 0.0, %v411
    %413 = vdwg.mxu0
    %v415 = vsel %vm78, %v393, 0
    %417 = vmatpush.msra.mxu0 0.0
    %418 = vmatpush.msra.mxu0 0.0
    %419 = vmatpush.msra.mxu0 0.0
    %420 = vmatpush.msra.mxu0 0.0
    %421 = vmatpush.msra.mxu0 0.0
    %422 = vmatpush.msra.mxu0 0.0
    %423 = vmatpush.msra.mxu0 0.0
    %424 = vmatpush.msra.mxu0 0.0
    %425 = vmatpush.msra.mxu0 0.0
    %426 = vmatpush.msra.mxu0 0.0
    %427 = vmatpush.msra.mxu0 0.0
    %428 = vmatpush.msra.mxu0 0.0
    %429 = vmatpush.msra.mxu0 0.0
    %430 = vmatpush.msra.mxu0 0.0
    %431 = vmatpush.msra.mxu0 %v84
    %432 = vmatpush.msra.mxu0 %v37
    %433 = vmatmul.f32.gmra.mxu0 %v415
    %v434 = vpop.f32.mrf.mxu0
    %v435 = vadd.f32 %v412, %v434
    %436 = vdwg.mxu0
    %v437 = vadd.f32 %v435, %v43
    %v438 = vxor.u32 %v437, 2147483648
    %v439 = vmul.f32 %v438, 1.442695
    %v440 = vpow.pop %v439
    %v441 = vadd.f32 %v440, 1.0
    %v442 = vrcp.pop %v441
    %v443 = vmul.f32 %v441, %v442
    %v444 = vsub.f32 1.0, %v443
    %v445 = vmul.f32 %v442, %v444
    %v446 = vadd.f32 %v442, %v445
    %vm447 = vweird.f32 %v441
    %vm448 = vweird.f32 %v442
    %vm449 = vmor %vm447, %vm448
    %v450 = vsel %vm449, %v442, %v446
    %v451 = vand.u32 2147483647, %v441
    %vm452 = vcmp.eq.f32.partialorder %v451, 8.507059e+37
    %v453 = vand.u32 %v441, 2147483648
    %v454 = vor.u32 1.1754944e-38, %v453
    %v455 = vsel %vm452, %v454, %v450
    %v456 = vmul.f32 1.0, %v455
    %v457 = vtanh.pop %v437
    %v458 = vmul.f32 %v456, %v301
    %460 = vrot.lane.b32.xlu0 %v457, 64
    %v461 = vpop.permute.xlu0 %460
    %v463 = vmul.f32 %v456, %v461
    %465 = vrot.lane.b32.xlu0 %v463, 32
    %v466 = vpop.permute.xlu0 %465
    %v468 = vadd.f32 %v458, %v466
    %v469 = vtanh.pop %v468
    %471 = vrot.lane.b32.xlu0 %v469, 64
    %v472 = vpop.permute.xlu0 %471
    %v474 = vmul.f32 %v456, %v472
    %476 = vrot.lane.b32.xlu0 %v474, 32
    %v477 = vpop.permute.xlu0 %476
    %v478 = vsel %vm54, %v477, 0
    %480 = vmatpush.msra.mxu0 0.0
    %481 = vmatpush.msra.mxu0 0.0
    %482 = vmatpush.msra.mxu0 0.0
    %483 = vmatpush.msra.mxu0 0.0
    %484 = vmatpush.msra.mxu0 0.0
    %485 = vmatpush.msra.mxu0 0.0
    %486 = vmatpush.msra.mxu0 0.0
    %487 = vmatpush.msra.mxu0 0.0
    %488 = vmatpush.msra.mxu0 0.0
    %489 = vmatpush.msra.mxu0 0.0
    %490 = vmatpush.msra.mxu0 0.0
    %491 = vmatpush.msra.mxu0 0.0
    %492 = vmatpush.msra.mxu0 %v47
    %493 = vmatpush.msra.mxu0 %v46
    %494 = vmatpush.msra.mxu0 %v45
    %495 = vmatpush.msra.mxu0 %v44
    %496 = vmatmul.f32.gmra.mxu0 %v478
    %v497 = vpop.f32.mrf.mxu0
    %v498 = vadd.f32 0.0, %v497
    %499 = vdwg.mxu0
    %v500 = vmul.f32 %v498, 0.2
    %v501 = vtanh.pop %v500
    %v502 = vmul.f32 %v501, 2.5
    %v503 = vsel %vm172, %v502, -inf
    %504 = vmax.xlane.f32.xlu0 %v503
    %v505 = vpop.xlane.xlu0 %504
    %v506 = vsub.f32 %v502, %v505
    %v507 = vmul.f32 %v506, 1.442695
    %v508 = vpow.pop %v507
    %v509 = vsel %vm172, %v508, 0.0
    %510 = vadd.xlane.f32.xlu0 %v509
    %v511 = vpop.xlane.xlu0 %510
    %v512 = vrcp.pop %v511
    %v513 = vmul.f32 %v508, %v512
    %v514 = vlog2.pop %v511
    %v515 = vmul.f32 %v514, 0.6931472
    %v516 = vsub.f32 %v506, %v515
    %v517 = vrot.slane %v48, 2
    %v519 = vadd.f32 %v502, %v517
    %v520 = vsel %vm172, %v519, -inf
    %521 = vmax.xlane.f32.xlu0 %v520
    %v522 = vpop.xlane.xlu0 %521
    %vm523 = vcmp.eq.f32.partialorder %v519, %v522
    %v524 = vsel %vm523, %v50, 8
    %v525 = vsel %vm172, %v524, 2147483647
    %v526 = vand.u32 %v525, 65535
    %v527 = vshra.s32 %v525, 16
    %v528 = vcvt.s32.f32 %v526
    %v529 = vcvt.s32.f32 %v527
    %530 = vmin.xlane.f32.xlu0 %v529
    %v531 = vpop.xlane.xlu0 %530
    %vm532 = vcmp.eq.f32.partialorder %v529, %v531
    %v533 = vsel %vm532, %v528, inf
    %534 = vmin.xlane.f32.xlu0 %v533
    %v535 = vpop.xlane.xlu0 %534
    %v536 = vcvt.f32.s32 %v535
    %v537 = vcvt.f32.s32 %v531
    %v538 = vshll.u32 %v537, 16
    %v539 = vadd.s32 %v538, %v536
    %vm540 = vcmp.eq.s32.totalorder %v50, 2
    %v541 = vcvt.s32.f32 %v539
    %v542 = vsel %vm540, %v541, %v376
    %vm543 = vcmp.eq.s32.totalorder %v50, %v539
    %v544 = vsel %vm543, 1, 0
    %v545 = vcvt.s32.f32 %v544
    %v546 = vmul.f32 %v516, %v545
    %v547 = vsel %vm172, %v546, 0.0
    %548 = vadd.xlane.f32.xlu0 %v547
    %v549 = vpop.xlane.xlu0 %548
    %v550 = vsub.f32 %v384, %v549
    %v551 = vmul.f32 %v516, %v513
    %v552 = vsel %vm172, %v551, 0.0
    %553 = vadd.xlane.f32.xlu0 %v552
    %v554 = vpop.xlane.xlu0 %553
    %v555 = vsub.f32 %v389, %v554
    %v556 = vadd.s32 %v539, 1
    %vm557 = vcmp.eq.s32.totalorder %v50, %v556
    %v558 = vsel %vm557, 1, 0
    %v559 = vcvt.s32.f32 %v558
    %560 = vmatpush.msra.mxu0 0.0
    %561 = vmatpush.msra.mxu0 0.0
    %562 = vmatpush.msra.mxu0 0.0
    %563 = vmatpush.msra.mxu0 0.0
    %564 = vmatpush.msra.mxu0 0.0
    %565 = vmatpush.msra.mxu0 0.0
    %566 = vmatpush.msra.mxu0 0.0
    %567 = vmatpush.msra.mxu0 0.0
    %568 = vmatpush.msra.mxu0 0.0
    %569 = vmatpush.msra.mxu0 0.0
    %570 = vmatpush.msra.mxu0 0.0
    %571 = vmatpush.msra.mxu0 0.0
    %572 = vmatpush.msra.mxu0 %v42
    %573 = vmatpush.msra.mxu0 %v41
    %574 = vmatpush.msra.mxu0 %v40
    %575 = vmatpush.msra.mxu0 %v39
    %576 = vmatmul.f32.gmra.mxu0 %v478
    %v577 = vpop.f32.mrf.mxu0
    %v578 = vadd.f32 0.0, %v577
    %579 = vdwg.mxu0
    %v581 = vsel %vm78, %v559, 0
    %583 = vmatpush.msra.mxu0 0.0
    %584 = vmatpush.msra.mxu0 0.0
    %585 = vmatpush.msra.mxu0 0.0
    %586 = vmatpush.msra.mxu0 0.0
    %587 = vmatpush.msra.mxu0 0.0
    %588 = vmatpush.msra.mxu0 0.0
    %589 = vmatpush.msra.mxu0 0.0
    %590 = vmatpush.msra.mxu0 0.0
    %591 = vmatpush.msra.mxu0 0.0
    %592 = vmatpush.msra.mxu0 0.0
    %593 = vmatpush.msra.mxu0 0.0
    %594 = vmatpush.msra.mxu0 0.0
    %595 = vmatpush.msra.mxu0 0.0
    %596 = vmatpush.msra.mxu0 0.0
    %597 = vmatpush.msra.mxu0 %v84
    %598 = vmatpush.msra.mxu0 %v37
    %599 = vmatmul.f32.gmra.mxu0 %v581
    %v600 = vpop.f32.mrf.mxu0
    %v601 = vadd.f32 %v578, %v600
    %602 = vdwg.mxu0
    %v603 = vadd.f32 %v601, %v43
    %v604 = vxor.u32 %v603, 2147483648
    %v605 = vmul.f32 %v604, 1.442695
    %v606 = vpow.pop %v605
    %v607 = vadd.f32 %v606, 1.0
    %v608 = vrcp.pop %v607
    %v609 = vmul.f32 %v607, %v608
    %v610 = vsub.f32 1.0, %v609
    %v611 = vmul.f32 %v608, %v610
    %v612 = vadd.f32 %v608, %v611
    %vm613 = vweird.f32 %v607
    %vm614 = vweird.f32 %v608
    %vm615 = vmor %vm613, %vm614
    %v616 = vsel %vm615, %v608, %v612
    %v617 = vand.u32 2147483647, %v607
    %vm618 = vcmp.eq.f32.partialorder %v617, 8.507059e+37
    %v619 = vand.u32 %v607, 2147483648
    %v620 = vor.u32 1.1754944e-38, %v619
    %v621 = vsel %vm618, %v620, %v616
    %v622 = vmul.f32 1.0, %v621
    %v623 = vtanh.pop %v603
    %v624 = vmul.f32 %v622, %v468
    %626 = vrot.lane.b32.xlu0 %v623, 64
    %v627 = vpop.permute.xlu0 %626
    %v629 = vmul.f32 %v622, %v627
    %631 = vrot.lane.b32.xlu0 %v629, 32
    %v632 = vpop.permute.xlu0 %631
    %v634 = vadd.f32 %v624, %v632
    %v635 = vtanh.pop %v634
    %637 = vrot.lane.b32.xlu0 %v635, 64
    %v638 = vpop.permute.xlu0 %637
    %v640 = vmul.f32 %v622, %v638
    %642 = vrot.lane.b32.xlu0 %v640, 32
    %v643 = vpop.permute.xlu0 %642
    %v644 = vsel %vm54, %v643, 0
    %646 = vmatpush.msra.mxu0 0.0
    %647 = vmatpush.msra.mxu0 0.0
    %648 = vmatpush.msra.mxu0 0.0
    %649 = vmatpush.msra.mxu0 0.0
    %650 = vmatpush.msra.mxu0 0.0
    %651 = vmatpush.msra.mxu0 0.0
    %652 = vmatpush.msra.mxu0 0.0
    %653 = vmatpush.msra.mxu0 0.0
    %654 = vmatpush.msra.mxu0 0.0
    %655 = vmatpush.msra.mxu0 0.0
    %656 = vmatpush.msra.mxu0 0.0
    %657 = vmatpush.msra.mxu0 0.0
    %658 = vmatpush.msra.mxu0 %v47
    %659 = vmatpush.msra.mxu0 %v46
    %660 = vmatpush.msra.mxu0 %v45
    %661 = vmatpush.msra.mxu0 %v44
    %662 = vmatmul.f32.gmra.mxu0 %v644
    %v663 = vpop.f32.mrf.mxu0
    %v664 = vadd.f32 0.0, %v663
    %665 = vdwg.mxu0
    %v666 = vmul.f32 %v664, 0.2
    %v667 = vtanh.pop %v666
    %v668 = vmul.f32 %v667, 2.5
    %v669 = vsel %vm172, %v668, -inf
    %670 = vmax.xlane.f32.xlu0 %v669
    %v671 = vpop.xlane.xlu0 %670
    %v672 = vsub.f32 %v668, %v671
    %v673 = vmul.f32 %v672, 1.442695
    %v674 = vpow.pop %v673
    %v675 = vsel %vm172, %v674, 0.0
    %676 = vadd.xlane.f32.xlu0 %v675
    %v677 = vpop.xlane.xlu0 %676
    %v678 = vrcp.pop %v677
    %v679 = vmul.f32 %v674, %v678
    %v680 = vlog2.pop %v677
    %v681 = vmul.f32 %v680, 0.6931472
    %v682 = vsub.f32 %v672, %v681
    %v683 = vrot.slane %v48, 3
    %v685 = vadd.f32 %v668, %v683
    %v686 = vsel %vm172, %v685, -inf
    %687 = vmax.xlane.f32.xlu0 %v686
    %v688 = vpop.xlane.xlu0 %687
    %vm689 = vcmp.eq.f32.partialorder %v685, %v688
    %v690 = vsel %vm689, %v50, 8
    %v691 = vsel %vm172, %v690, 2147483647
    %v692 = vand.u32 %v691, 65535
    %v693 = vshra.s32 %v691, 16
    %v694 = vcvt.s32.f32 %v692
    %v695 = vcvt.s32.f32 %v693
    %696 = vmin.xlane.f32.xlu0 %v695
    %v697 = vpop.xlane.xlu0 %696
    %vm698 = vcmp.eq.f32.partialorder %v695, %v697
    %v699 = vsel %vm698, %v694, inf
    %700 = vmin.xlane.f32.xlu0 %v699
    %v701 = vpop.xlane.xlu0 %700
    %v702 = vcvt.f32.s32 %v701
    %v703 = vcvt.f32.s32 %v697
    %v704 = vshll.u32 %v703, 16
    %v705 = vadd.s32 %v704, %v702
    %vm706 = vcmp.eq.s32.totalorder %v50, 3
    %v707 = vcvt.s32.f32 %v705
    %v708 = vsel %vm706, %v707, %v542
    %vm709 = vcmp.eq.s32.totalorder %v50, %v705
    %v710 = vsel %vm709, 1, 0
    %v711 = vcvt.s32.f32 %v710
    %v712 = vmul.f32 %v682, %v711
    %v713 = vsel %vm172, %v712, 0.0
    %714 = vadd.xlane.f32.xlu0 %v713
    %v715 = vpop.xlane.xlu0 %714
    %v716 = vsub.f32 %v550, %v715
    %v717 = vmul.f32 %v682, %v679
    %v718 = vsel %vm172, %v717, 0.0
    %719 = vadd.xlane.f32.xlu0 %v718
    %v720 = vpop.xlane.xlu0 %719
    %v721 = vsub.f32 %v555, %v720
    %v722 = vadd.s32 %v705, 1
    %vm723 = vcmp.eq.s32.totalorder %v50, %v722
    %v724 = vsel %vm723, 1, 0
    %v725 = vcvt.s32.f32 %v724
    %726 = vmatpush.msra.mxu0 0.0
    %727 = vmatpush.msra.mxu0 0.0
    %728 = vmatpush.msra.mxu0 0.0
    %729 = vmatpush.msra.mxu0 0.0
    %730 = vmatpush.msra.mxu0 0.0
    %731 = vmatpush.msra.mxu0 0.0
    %732 = vmatpush.msra.mxu0 0.0
    %733 = vmatpush.msra.mxu0 0.0
    %734 = vmatpush.msra.mxu0 0.0
    %735 = vmatpush.msra.mxu0 0.0
    %736 = vmatpush.msra.mxu0 0.0
    %737 = vmatpush.msra.mxu0 0.0
    %738 = vmatpush.msra.mxu0 %v42
    %739 = vmatpush.msra.mxu0 %v41
    %740 = vmatpush.msra.mxu0 %v40
    %741 = vmatpush.msra.mxu0 %v39
    %742 = vmatmul.f32.gmra.mxu0 %v644
    %v743 = vpop.f32.mrf.mxu0
    %v744 = vadd.f32 0.0, %v743
    %745 = vdwg.mxu0
    %v747 = vsel %vm78, %v725, 0
    %749 = vmatpush.msra.mxu0 0.0
    %750 = vmatpush.msra.mxu0 0.0
    %751 = vmatpush.msra.mxu0 0.0
    %752 = vmatpush.msra.mxu0 0.0
    %753 = vmatpush.msra.mxu0 0.0
    %754 = vmatpush.msra.mxu0 0.0
    %755 = vmatpush.msra.mxu0 0.0
    %756 = vmatpush.msra.mxu0 0.0
    %757 = vmatpush.msra.mxu0 0.0
    %758 = vmatpush.msra.mxu0 0.0
    %759 = vmatpush.msra.mxu0 0.0
    %760 = vmatpush.msra.mxu0 0.0
    %761 = vmatpush.msra.mxu0 0.0
    %762 = vmatpush.msra.mxu0 0.0
    %763 = vmatpush.msra.mxu0 %v84
    %764 = vmatpush.msra.mxu0 %v37
    %765 = vmatmul.f32.gmra.mxu0 %v747
    %v766 = vpop.f32.mrf.mxu0
    %v767 = vadd.f32 %v744, %v766
    %768 = vdwg.mxu0
    %v769 = vadd.f32 %v767, %v43
    %v770 = vxor.u32 %v769, 2147483648
    %v771 = vmul.f32 %v770, 1.442695
    %v772 = vpow.pop %v771
    %v773 = vadd.f32 %v772, 1.0
    %v774 = vrcp.pop %v773
    %v775 = vmul.f32 %v773, %v774
    %v776 = vsub.f32 1.0, %v775
    %v777 = vmul.f32 %v774, %v776
    %v778 = vadd.f32 %v774, %v777
    %vm779 = vweird.f32 %v773
    %vm780 = vweird.f32 %v774
    %vm781 = vmor %vm779, %vm780
    %v782 = vsel %vm781, %v774, %v778
    %v783 = vand.u32 2147483647, %v773
    %vm784 = vcmp.eq.f32.partialorder %v783, 8.507059e+37
    %v785 = vand.u32 %v773, 2147483648
    %v786 = vor.u32 1.1754944e-38, %v785
    %v787 = vsel %vm784, %v786, %v782
    %v788 = vmul.f32 1.0, %v787
    %v789 = vtanh.pop %v769
    %v790 = vmul.f32 %v788, %v634
    %792 = vrot.lane.b32.xlu0 %v789, 64
    %v793 = vpop.permute.xlu0 %792
    %v795 = vmul.f32 %v788, %v793
    %797 = vrot.lane.b32.xlu0 %v795, 32
    %v798 = vpop.permute.xlu0 %797
    %v800 = vadd.f32 %v790, %v798
    %v801 = vtanh.pop %v800
    %803 = vrot.lane.b32.xlu0 %v801, 64
    %v804 = vpop.permute.xlu0 %803
    %v806 = vmul.f32 %v788, %v804
    %808 = vrot.lane.b32.xlu0 %v806, 32
    %v809 = vpop.permute.xlu0 %808
    %v810 = vsel %vm54, %v809, 0
    %812 = vmatpush.msra.mxu0 0.0
    %813 = vmatpush.msra.mxu0 0.0
    %814 = vmatpush.msra.mxu0 0.0
    %815 = vmatpush.msra.mxu0 0.0
    %816 = vmatpush.msra.mxu0 0.0
    %817 = vmatpush.msra.mxu0 0.0
    %818 = vmatpush.msra.mxu0 0.0
    %819 = vmatpush.msra.mxu0 0.0
    %820 = vmatpush.msra.mxu0 0.0
    %821 = vmatpush.msra.mxu0 0.0
    %822 = vmatpush.msra.mxu0 0.0
    %823 = vmatpush.msra.mxu0 0.0
    %824 = vmatpush.msra.mxu0 %v47
    %825 = vmatpush.msra.mxu0 %v46
    %826 = vmatpush.msra.mxu0 %v45
    %827 = vmatpush.msra.mxu0 %v44
    %828 = vmatmul.f32.gmra.mxu0 %v810
    %v829 = vpop.f32.mrf.mxu0
    %v830 = vadd.f32 0.0, %v829
    %831 = vdwg.mxu0
    %v832 = vmul.f32 %v830, 0.2
    %v833 = vtanh.pop %v832
    %v834 = vmul.f32 %v833, 2.5
    %v835 = vsel %vm172, %v834, -inf
    %836 = vmax.xlane.f32.xlu0 %v835
    %v837 = vpop.xlane.xlu0 %836
    %v838 = vsub.f32 %v834, %v837
    %v839 = vmul.f32 %v838, 1.442695
    %v840 = vpow.pop %v839
    %v841 = vsel %vm172, %v840, 0.0
    %842 = vadd.xlane.f32.xlu0 %v841
    %v843 = vpop.xlane.xlu0 %842
    %v844 = vrcp.pop %v843
    %v845 = vmul.f32 %v840, %v844
    %v846 = vlog2.pop %v843
    %v847 = vmul.f32 %v846, 0.6931472
    %v848 = vsub.f32 %v838, %v847
    %v849 = vrot.slane %v48, 4
    %v851 = vadd.f32 %v834, %v849
    %v852 = vsel %vm172, %v851, -inf
    %853 = vmax.xlane.f32.xlu0 %v852
    %v854 = vpop.xlane.xlu0 %853
    %vm855 = vcmp.eq.f32.partialorder %v851, %v854
    %v856 = vsel %vm855, %v50, 8
    %v857 = vsel %vm172, %v856, 2147483647
    %v858 = vand.u32 %v857, 65535
    %v859 = vshra.s32 %v857, 16
    %v860 = vcvt.s32.f32 %v858
    %v861 = vcvt.s32.f32 %v859
    %862 = vmin.xlane.f32.xlu0 %v861
    %v863 = vpop.xlane.xlu0 %862
    %vm864 = vcmp.eq.f32.partialorder %v861, %v863
    %v865 = vsel %vm864, %v860, inf
    %866 = vmin.xlane.f32.xlu0 %v865
    %v867 = vpop.xlane.xlu0 %866
    %v868 = vcvt.f32.s32 %v867
    %v869 = vcvt.f32.s32 %v863
    %v870 = vshll.u32 %v869, 16
    %v871 = vadd.s32 %v870, %v868
    %vm872 = vcmp.eq.s32.totalorder %v50, 4
    %v873 = vcvt.s32.f32 %v871
    %v874 = vsel %vm872, %v873, %v708
    %vm875 = vcmp.eq.s32.totalorder %v50, %v871
    %v876 = vsel %vm875, 1, 0
    %v877 = vcvt.s32.f32 %v876
    %v878 = vmul.f32 %v848, %v877
    %v879 = vsel %vm172, %v878, 0.0
    %880 = vadd.xlane.f32.xlu0 %v879
    %v881 = vpop.xlane.xlu0 %880
    %v882 = vsub.f32 %v716, %v881
    %v883 = vmul.f32 %v848, %v845
    %v884 = vsel %vm172, %v883, 0.0
    %885 = vadd.xlane.f32.xlu0 %v884
    %v886 = vpop.xlane.xlu0 %885
    %v887 = vsub.f32 %v721, %v886
    %v888 = vadd.s32 %v871, 1
    %vm889 = vcmp.eq.s32.totalorder %v50, %v888
    %v890 = vsel %vm889, 1, 0
    %v891 = vcvt.s32.f32 %v890
    %892 = vmatpush.msra.mxu0 0.0
    %893 = vmatpush.msra.mxu0 0.0
    %894 = vmatpush.msra.mxu0 0.0
    %895 = vmatpush.msra.mxu0 0.0
    %896 = vmatpush.msra.mxu0 0.0
    %897 = vmatpush.msra.mxu0 0.0
    %898 = vmatpush.msra.mxu0 0.0
    %899 = vmatpush.msra.mxu0 0.0
    %900 = vmatpush.msra.mxu0 0.0
    %901 = vmatpush.msra.mxu0 0.0
    %902 = vmatpush.msra.mxu0 0.0
    %903 = vmatpush.msra.mxu0 0.0
    %904 = vmatpush.msra.mxu0 %v42
    %905 = vmatpush.msra.mxu0 %v41
    %906 = vmatpush.msra.mxu0 %v40
    %907 = vmatpush.msra.mxu0 %v39
    %908 = vmatmul.f32.gmra.mxu0 %v810
    %v909 = vpop.f32.mrf.mxu0
    %v910 = vadd.f32 0.0, %v909
    %911 = vdwg.mxu0
    %v913 = vsel %vm78, %v891, 0
    %915 = vmatpush.msra.mxu0 0.0
    %916 = vmatpush.msra.mxu0 0.0
    %917 = vmatpush.msra.mxu0 0.0
    %918 = vmatpush.msra.mxu0 0.0
    %919 = vmatpush.msra.mxu0 0.0
    %920 = vmatpush.msra.mxu0 0.0
    %921 = vmatpush.msra.mxu0 0.0
    %922 = vmatpush.msra.mxu0 0.0
    %923 = vmatpush.msra.mxu0 0.0
    %924 = vmatpush.msra.mxu0 0.0
    %925 = vmatpush.msra.mxu0 0.0
    %926 = vmatpush.msra.mxu0 0.0
    %927 = vmatpush.msra.mxu0 0.0
    %928 = vmatpush.msra.mxu0 0.0
    %929 = vmatpush.msra.mxu0 %v84
    %930 = vmatpush.msra.mxu0 %v37
    %931 = vmatmul.f32.gmra.mxu0 %v913
    %v932 = vpop.f32.mrf.mxu0
    %v933 = vadd.f32 %v910, %v932
    %934 = vdwg.mxu0
    %v935 = vadd.f32 %v933, %v43
    %v936 = vxor.u32 %v935, 2147483648
    %v937 = vmul.f32 %v936, 1.442695
    %v938 = vpow.pop %v937
    %v939 = vadd.f32 %v938, 1.0
    %v940 = vrcp.pop %v939
    %v941 = vmul.f32 %v939, %v940
    %v942 = vsub.f32 1.0, %v941
    %v943 = vmul.f32 %v940, %v942
    %v944 = vadd.f32 %v940, %v943
    %vm945 = vweird.f32 %v939
    %vm946 = vweird.f32 %v940
    %vm947 = vmor %vm945, %vm946
    %v948 = vsel %vm947, %v940, %v944
    %v949 = vand.u32 2147483647, %v939
    %vm950 = vcmp.eq.f32.partialorder %v949, 8.507059e+37
    %v951 = vand.u32 %v939, 2147483648
    %v952 = vor.u32 1.1754944e-38, %v951
    %v953 = vsel %vm950, %v952, %v948
    %v954 = vmul.f32 1.0, %v953
    %v955 = vtanh.pop %v935
    %v956 = vmul.f32 %v954, %v800
    %958 = vrot.lane.b32.xlu0 %v955, 64
    %v959 = vpop.permute.xlu0 %958
    %v961 = vmul.f32 %v954, %v959
    %963 = vrot.lane.b32.xlu0 %v961, 32
    %v964 = vpop.permute.xlu0 %963
    %v966 = vadd.f32 %v956, %v964
    %v967 = vtanh.pop %v966
    %969 = vrot.lane.b32.xlu0 %v967, 64
    %v970 = vpop.permute.xlu0 %969
    %v972 = vmul.f32 %v954, %v970
    %974 = vrot.lane.b32.xlu0 %v972, 32
    %v975 = vpop.permute.xlu0 %974
    %v976 = vsel %vm54, %v975, 0
    %978 = vmatpush.msra.mxu0 0.0
    %979 = vmatpush.msra.mxu0 0.0
    %980 = vmatpush.msra.mxu0 0.0
    %981 = vmatpush.msra.mxu0 0.0
    %982 = vmatpush.msra.mxu0 0.0
    %983 = vmatpush.msra.mxu0 0.0
    %984 = vmatpush.msra.mxu0 0.0
    %985 = vmatpush.msra.mxu0 0.0
    %986 = vmatpush.msra.mxu0 0.0
    %987 = vmatpush.msra.mxu0 0.0
    %988 = vmatpush.msra.mxu0 0.0
    %989 = vmatpush.msra.mxu0 0.0
    %990 = vmatpush.msra.mxu0 %v47
    %991 = vmatpush.msra.mxu0 %v46
    %992 = vmatpush.msra.mxu0 %v45
    %993 = vmatpush.msra.mxu0 %v44
    %994 = vmatmul.f32.gmra.mxu0 %v976
    %v995 = vpop.f32.mrf.mxu0
    %v996 = vadd.f32 0.0, %v995
    %997 = vdwg.mxu0
    %v998 = vmul.f32 %v996, 0.2
    %v999 = vtanh.pop %v998
    %v1000 = vmul.f32 %v999, 2.5
    %v1001 = vsel %vm172, %v1000, -inf
    %1002 = vmax.xlane.f32.xlu0 %v1001
    %v1003 = vpop.xlane.xlu0 %1002
    %v1004 = vsub.f32 %v1000, %v1003
    %v1005 = vmul.f32 %v1004, 1.442695
    %v1006 = vpow.pop %v1005
    %v1007 = vsel %vm172, %v1006, 0.0
    %1008 = vadd.xlane.f32.xlu0 %v1007
    %v1009 = vpop.xlane.xlu0 %1008
    %v1010 = vrcp.pop %v1009
    %v1011 = vmul.f32 %v1006, %v1010
    %v1012 = vlog2.pop %v1009
    %v1013 = vmul.f32 %v1012, 0.6931472
    %v1014 = vsub.f32 %v1004, %v1013
    %v1015 = vrot.slane %v48, 5
    %v1017 = vadd.f32 %v1000, %v1015
    %v1018 = vsel %vm172, %v1017, -inf
    %1019 = vmax.xlane.f32.xlu0 %v1018
    %v1020 = vpop.xlane.xlu0 %1019
    %vm1021 = vcmp.eq.f32.partialorder %v1017, %v1020
    %v1022 = vsel %vm1021, %v50, 8
    %v1023 = vsel %vm172, %v1022, 2147483647
    %v1024 = vand.u32 %v1023, 65535
    %v1025 = vshra.s32 %v1023, 16
    %v1026 = vcvt.s32.f32 %v1024
    %v1027 = vcvt.s32.f32 %v1025
    %1028 = vmin.xlane.f32.xlu0 %v1027
    %v1029 = vpop.xlane.xlu0 %1028
    %vm1030 = vcmp.eq.f32.partialorder %v1027, %v1029
    %v1031 = vsel %vm1030, %v1026, inf
    %1032 = vmin.xlane.f32.xlu0 %v1031
    %v1033 = vpop.xlane.xlu0 %1032
    %v1034 = vcvt.f32.s32 %v1033
    %v1035 = vcvt.f32.s32 %v1029
    %v1036 = vshll.u32 %v1035, 16
    %v1037 = vadd.s32 %v1036, %v1034
    %vm1038 = vcmp.eq.s32.totalorder %v50, 5
    %v1039 = vcvt.s32.f32 %v1037
    %v1040 = vsel %vm1038, %v1039, %v874
    %vm1041 = vcmp.eq.s32.totalorder %v50, %v1037
    %v1042 = vsel %vm1041, 1, 0
    %v1043 = vcvt.s32.f32 %v1042
    %v1044 = vmul.f32 %v1014, %v1043
    %v1045 = vsel %vm172, %v1044, 0.0
    %1046 = vadd.xlane.f32.xlu0 %v1045
    %v1047 = vpop.xlane.xlu0 %1046
    %v1048 = vsub.f32 %v882, %v1047
    %v1049 = vmul.f32 %v1014, %v1011
    %v1050 = vsel %vm172, %v1049, 0.0
    %1051 = vadd.xlane.f32.xlu0 %v1050
    %v1052 = vpop.xlane.xlu0 %1051
    %v1053 = vsub.f32 %v887, %v1052
    %v1054 = vadd.s32 %v1037, 1
    %vm1055 = vcmp.eq.s32.totalorder %v50, %v1054
    %v1056 = vsel %vm1055, 1, 0
    %v1057 = vcvt.s32.f32 %v1056
    %1058 = vmatpush.msra.mxu0 0.0
    %1059 = vmatpush.msra.mxu0 0.0
    %1060 = vmatpush.msra.mxu0 0.0
    %1061 = vmatpush.msra.mxu0 0.0
    %1062 = vmatpush.msra.mxu0 0.0
    %1063 = vmatpush.msra.mxu0 0.0
    %1064 = vmatpush.msra.mxu0 0.0
    %1065 = vmatpush.msra.mxu0 0.0
    %1066 = vmatpush.msra.mxu0 0.0
    %1067 = vmatpush.msra.mxu0 0.0
    %1068 = vmatpush.msra.mxu0 0.0
    %1069 = vmatpush.msra.mxu0 0.0
    %1070 = vmatpush.msra.mxu0 %v42
    %1071 = vmatpush.msra.mxu0 %v41
    %1072 = vmatpush.msra.mxu0 %v40
    %1073 = vmatpush.msra.mxu0 %v39
    %1074 = vmatmul.f32.gmra.mxu0 %v976
    %v1075 = vpop.f32.mrf.mxu0
    %v1076 = vadd.f32 0.0, %v1075
    %1077 = vdwg.mxu0
    %v1079 = vsel %vm78, %v1057, 0
    %1081 = vmatpush.msra.mxu0 0.0
    %1082 = vmatpush.msra.mxu0 0.0
    %1083 = vmatpush.msra.mxu0 0.0
    %1084 = vmatpush.msra.mxu0 0.0
    %1085 = vmatpush.msra.mxu0 0.0
    %1086 = vmatpush.msra.mxu0 0.0
    %1087 = vmatpush.msra.mxu0 0.0
    %1088 = vmatpush.msra.mxu0 0.0
    %1089 = vmatpush.msra.mxu0 0.0
    %1090 = vmatpush.msra.mxu0 0.0
    %1091 = vmatpush.msra.mxu0 0.0
    %1092 = vmatpush.msra.mxu0 0.0
    %1093 = vmatpush.msra.mxu0 0.0
    %1094 = vmatpush.msra.mxu0 0.0
    %1095 = vmatpush.msra.mxu0 %v84
    %1096 = vmatpush.msra.mxu0 %v37
    %1097 = vmatmul.f32.gmra.mxu0 %v1079
    %v1098 = vpop.f32.mrf.mxu0
    %v1099 = vadd.f32 %v1076, %v1098
    %1100 = vdwg.mxu0
    %v1101 = vadd.f32 %v1099, %v43
    %v1102 = vxor.u32 %v1101, 2147483648
    %v1103 = vmul.f32 %v1102, 1.442695
    %v1104 = vpow.pop %v1103
    %v1105 = vadd.f32 %v1104, 1.0
    %v1106 = vrcp.pop %v1105
    %v1107 = vmul.f32 %v1105, %v1106
    %v1108 = vsub.f32 1.0, %v1107
    %v1109 = vmul.f32 %v1106, %v1108
    %v1110 = vadd.f32 %v1106, %v1109
    %vm1111 = vweird.f32 %v1105
    %vm1112 = vweird.f32 %v1106
    %vm1113 = vmor %vm1111, %vm1112
    %v1114 = vsel %vm1113, %v1106, %v1110
    %v1115 = vand.u32 2147483647, %v1105
    %vm1116 = vcmp.eq.f32.partialorder %v1115, 8.507059e+37
    %v1117 = vand.u32 %v1105, 2147483648
    %v1118 = vor.u32 1.1754944e-38, %v1117
    %v1119 = vsel %vm1116, %v1118, %v1114
    %v1120 = vmul.f32 1.0, %v1119
    %v1121 = vtanh.pop %v1101
    %v1122 = vmul.f32 %v1120, %v966
    %1124 = vrot.lane.b32.xlu0 %v1121, 64
    %v1125 = vpop.permute.xlu0 %1124
    %v1127 = vmul.f32 %v1120, %v1125
    %1129 = vrot.lane.b32.xlu0 %v1127, 32
    %v1130 = vpop.permute.xlu0 %1129
    %v1132 = vadd.f32 %v1122, %v1130
    %v1133 = vtanh.pop %v1132
    %1135 = vrot.lane.b32.xlu0 %v1133, 64
    %v1136 = vpop.permute.xlu0 %1135
    %v1138 = vmul.f32 %v1120, %v1136
    %1140 = vrot.lane.b32.xlu0 %v1138, 32
    %v1141 = vpop.permute.xlu0 %1140
    %v1142 = vsel %vm54, %v1141, 0
    %1144 = vmatpush.msra.mxu0 0.0
    %1145 = vmatpush.msra.mxu0 0.0
    %1146 = vmatpush.msra.mxu0 0.0
    %1147 = vmatpush.msra.mxu0 0.0
    %1148 = vmatpush.msra.mxu0 0.0
    %1149 = vmatpush.msra.mxu0 0.0
    %1150 = vmatpush.msra.mxu0 0.0
    %1151 = vmatpush.msra.mxu0 0.0
    %1152 = vmatpush.msra.mxu0 0.0
    %1153 = vmatpush.msra.mxu0 0.0
    %1154 = vmatpush.msra.mxu0 0.0
    %1155 = vmatpush.msra.mxu0 0.0
    %1156 = vmatpush.msra.mxu0 %v47
    %1157 = vmatpush.msra.mxu0 %v46
    %1158 = vmatpush.msra.mxu0 %v45
    %1159 = vmatpush.msra.mxu0 %v44
    %1160 = vmatmul.f32.gmra.mxu0 %v1142
    %v1161 = vpop.f32.mrf.mxu0
    %v1162 = vadd.f32 0.0, %v1161
    %1163 = vdwg.mxu0
    %v1164 = vmul.f32 %v1162, 0.2
    %v1165 = vtanh.pop %v1164
    %v1166 = vmul.f32 %v1165, 2.5
    %v1167 = vsel %vm172, %v1166, -inf
    %1168 = vmax.xlane.f32.xlu0 %v1167
    %v1169 = vpop.xlane.xlu0 %1168
    %v1170 = vsub.f32 %v1166, %v1169
    %v1171 = vmul.f32 %v1170, 1.442695
    %v1172 = vpow.pop %v1171
    %v1173 = vsel %vm172, %v1172, 0.0
    %1174 = vadd.xlane.f32.xlu0 %v1173
    %v1175 = vpop.xlane.xlu0 %1174
    %v1176 = vrcp.pop %v1175
    %v1177 = vmul.f32 %v1172, %v1176
    %v1178 = vlog2.pop %v1175
    %v1179 = vmul.f32 %v1178, 0.6931472
    %v1180 = vsub.f32 %v1170, %v1179
    %v1181 = vrot.slane %v48, 6
    %v1183 = vadd.f32 %v1166, %v1181
    %v1184 = vsel %vm172, %v1183, -inf
    %1185 = vmax.xlane.f32.xlu0 %v1184
    %v1186 = vpop.xlane.xlu0 %1185
    %vm1187 = vcmp.eq.f32.partialorder %v1183, %v1186
    %v1188 = vsel %vm1187, %v50, 8
    %v1189 = vsel %vm172, %v1188, 2147483647
    %v1190 = vand.u32 %v1189, 65535
    %v1191 = vshra.s32 %v1189, 16
    %v1192 = vcvt.s32.f32 %v1190
    %v1193 = vcvt.s32.f32 %v1191
    %1194 = vmin.xlane.f32.xlu0 %v1193
    %v1195 = vpop.xlane.xlu0 %1194
    %vm1196 = vcmp.eq.f32.partialorder %v1193, %v1195
    %v1197 = vsel %vm1196, %v1192, inf
    %1198 = vmin.xlane.f32.xlu0 %v1197
    %v1199 = vpop.xlane.xlu0 %1198
    %v1200 = vcvt.f32.s32 %v1199
    %v1201 = vcvt.f32.s32 %v1195
    %v1202 = vshll.u32 %v1201, 16
    %v1203 = vadd.s32 %v1202, %v1200
    %vm1204 = vcmp.eq.s32.totalorder %v50, 6
    %v1205 = vcvt.s32.f32 %v1203
    %v1206 = vsel %vm1204, %v1205, %v1040
    %vm1207 = vcmp.eq.s32.totalorder %v50, %v1203
    %v1208 = vsel %vm1207, 1, 0
    %v1209 = vcvt.s32.f32 %v1208
    %v1210 = vmul.f32 %v1180, %v1209
    %v1211 = vsel %vm172, %v1210, 0.0
    %1212 = vadd.xlane.f32.xlu0 %v1211
    %v1213 = vpop.xlane.xlu0 %1212
    %v1214 = vsub.f32 %v1048, %v1213
    %v1215 = vmul.f32 %v1180, %v1177
    %v1216 = vsel %vm172, %v1215, 0.0
    %1217 = vadd.xlane.f32.xlu0 %v1216
    %v1218 = vpop.xlane.xlu0 %1217
    %v1219 = vsub.f32 %v1053, %v1218
    %v1220 = vadd.s32 %v1203, 1
    %vm1221 = vcmp.eq.s32.totalorder %v50, %v1220
    %v1222 = vsel %vm1221, 1, 0
    %v1223 = vcvt.s32.f32 %v1222
    %1224 = vmatpush.msra.mxu0 0.0
    %1225 = vmatpush.msra.mxu0 0.0
    %1226 = vmatpush.msra.mxu0 0.0
    %1227 = vmatpush.msra.mxu0 0.0
    %1228 = vmatpush.msra.mxu0 0.0
    %1229 = vmatpush.msra.mxu0 0.0
    %1230 = vmatpush.msra.mxu0 0.0
    %1231 = vmatpush.msra.mxu0 0.0
    %1232 = vmatpush.msra.mxu0 0.0
    %1233 = vmatpush.msra.mxu0 0.0
    %1234 = vmatpush.msra.mxu0 0.0
    %1235 = vmatpush.msra.mxu0 0.0
    %1236 = vmatpush.msra.mxu0 %v42
    %1237 = vmatpush.msra.mxu0 %v41
    %1238 = vmatpush.msra.mxu0 %v40
    %1239 = vmatpush.msra.mxu0 %v39
    %1240 = vmatmul.f32.gmra.mxu0 %v1142
    %v1241 = vpop.f32.mrf.mxu0
    %v1242 = vadd.f32 0.0, %v1241
    %1243 = vdwg.mxu0
    %v1245 = vsel %vm78, %v1223, 0
    %1247 = vmatpush.msra.mxu0 0.0
    %1248 = vmatpush.msra.mxu0 0.0
    %1249 = vmatpush.msra.mxu0 0.0
    %1250 = vmatpush.msra.mxu0 0.0
    %1251 = vmatpush.msra.mxu0 0.0
    %1252 = vmatpush.msra.mxu0 0.0
    %1253 = vmatpush.msra.mxu0 0.0
    %1254 = vmatpush.msra.mxu0 0.0
    %1255 = vmatpush.msra.mxu0 0.0
    %1256 = vmatpush.msra.mxu0 0.0
    %1257 = vmatpush.msra.mxu0 0.0
    %1258 = vmatpush.msra.mxu0 0.0
    %1259 = vmatpush.msra.mxu0 0.0
    %1260 = vmatpush.msra.mxu0 0.0
    %1261 = vmatpush.msra.mxu0 %v84
    %1262 = vmatpush.msra.mxu0 %v37
    %1263 = vmatmul.f32.gmra.mxu0 %v1245
    %v1264 = vpop.f32.mrf.mxu0
    %v1265 = vadd.f32 %v1242, %v1264
    %1266 = vdwg.mxu0
    %v1267 = vadd.f32 %v1265, %v43
    %v1268 = vxor.u32 %v1267, 2147483648
    %v1269 = vmul.f32 %v1268, 1.442695
    %v1270 = vpow.pop %v1269
    %v1271 = vadd.f32 %v1270, 1.0
    %v1272 = vrcp.pop %v1271
    %v1273 = vmul.f32 %v1271, %v1272
    %v1274 = vsub.f32 1.0, %v1273
    %v1275 = vmul.f32 %v1272, %v1274
    %v1276 = vadd.f32 %v1272, %v1275
    %vm1277 = vweird.f32 %v1271
    %vm1278 = vweird.f32 %v1272
    %vm1279 = vmor %vm1277, %vm1278
    %v1280 = vsel %vm1279, %v1272, %v1276
    %v1281 = vand.u32 2147483647, %v1271
    %vm1282 = vcmp.eq.f32.partialorder %v1281, 8.507059e+37
    %v1283 = vand.u32 %v1271, 2147483648
    %v1284 = vor.u32 1.1754944e-38, %v1283
    %v1285 = vsel %vm1282, %v1284, %v1280
    %v1286 = vmul.f32 1.0, %v1285
    %v1287 = vtanh.pop %v1267
    %v1288 = vmul.f32 %v1286, %v1132
    %1290 = vrot.lane.b32.xlu0 %v1287, 64
    %v1291 = vpop.permute.xlu0 %1290
    %v1293 = vmul.f32 %v1286, %v1291
    %1295 = vrot.lane.b32.xlu0 %v1293, 32
    %v1296 = vpop.permute.xlu0 %1295
    %v1298 = vadd.f32 %v1288, %v1296
    %v1299 = vtanh.pop %v1298
    %1301 = vrot.lane.b32.xlu0 %v1299, 64
    %v1302 = vpop.permute.xlu0 %1301
    %v1304 = vmul.f32 %v1286, %v1302
    %1306 = vrot.lane.b32.xlu0 %v1304, 32
    %v1307 = vpop.permute.xlu0 %1306
    %v1308 = vsel %vm54, %v1307, 0
    %1310 = vmatpush.msra.mxu0 0.0
    %1311 = vmatpush.msra.mxu0 0.0
    %1312 = vmatpush.msra.mxu0 0.0
    %1313 = vmatpush.msra.mxu0 0.0
    %1314 = vmatpush.msra.mxu0 0.0
    %1315 = vmatpush.msra.mxu0 0.0
    %1316 = vmatpush.msra.mxu0 0.0
    %1317 = vmatpush.msra.mxu0 0.0
    %1318 = vmatpush.msra.mxu0 0.0
    %1319 = vmatpush.msra.mxu0 0.0
    %1320 = vmatpush.msra.mxu0 0.0
    %1321 = vmatpush.msra.mxu0 0.0
    %1322 = vmatpush.msra.mxu0 %v47
    %1323 = vmatpush.msra.mxu0 %v46
    %1324 = vmatpush.msra.mxu0 %v45
    %1325 = vmatpush.msra.mxu0 %v44
    %1326 = vmatmul.f32.gmra.mxu0 %v1308
    %v1327 = vpop.f32.mrf.mxu0
    %v1328 = vadd.f32 0.0, %v1327
    %1329 = vdwg.mxu0
    %v1330 = vmul.f32 %v1328, 0.2
    %v1331 = vtanh.pop %v1330
    %v1332 = vmul.f32 %v1331, 2.5
    %v1333 = vsel %vm172, %v1332, -inf
    %1334 = vmax.xlane.f32.xlu0 %v1333
    %v1335 = vpop.xlane.xlu0 %1334
    %v1336 = vsub.f32 %v1332, %v1335
    %v1337 = vmul.f32 %v1336, 1.442695
    %v1338 = vpow.pop %v1337
    %v1339 = vsel %vm172, %v1338, 0.0
    %1340 = vadd.xlane.f32.xlu0 %v1339
    %v1341 = vpop.xlane.xlu0 %1340
    %v1342 = vrcp.pop %v1341
    %v1343 = vmul.f32 %v1338, %v1342
    %v1344 = vlog2.pop %v1341
    %v1345 = vmul.f32 %v1344, 0.6931472
    %v1346 = vsub.f32 %v1336, %v1345
    %v1347 = vrot.slane %v48, 7
    %v1349 = vadd.f32 %v1332, %v1347
    %v1350 = vsel %vm172, %v1349, -inf
    %1351 = vmax.xlane.f32.xlu0 %v1350
    %v1352 = vpop.xlane.xlu0 %1351
    %vm1353 = vcmp.eq.f32.partialorder %v1349, %v1352
    %v1354 = vsel %vm1353, %v50, 8
    %v1355 = vsel %vm172, %v1354, 2147483647
    %v1356 = vand.u32 %v1355, 65535
    %v1357 = vshra.s32 %v1355, 16
    %v1358 = vcvt.s32.f32 %v1356
    %v1359 = vcvt.s32.f32 %v1357
    %1360 = vmin.xlane.f32.xlu0 %v1359
    %v1361 = vpop.xlane.xlu0 %1360
    %vm1362 = vcmp.eq.f32.partialorder %v1359, %v1361
    %v1363 = vsel %vm1362, %v1358, inf
    %1364 = vmin.xlane.f32.xlu0 %v1363
    %v1365 = vpop.xlane.xlu0 %1364
    %v1366 = vcvt.f32.s32 %v1365
    %v1367 = vcvt.f32.s32 %v1361
    %v1368 = vshll.u32 %v1367, 16
    %v1369 = vadd.s32 %v1368, %v1366
    %vm1370 = vcmp.eq.s32.totalorder %v50, 7
    %v1371 = vcvt.s32.f32 %v1369
    %v1372 = vsel %vm1370, %v1371, %v1206
    %vm1373 = vcmp.eq.s32.totalorder %v50, %v1369
    %v1374 = vsel %vm1373, 1, 0
    %v1375 = vcvt.s32.f32 %v1374
    %v1376 = vmul.f32 %v1346, %v1375
    %v1377 = vsel %vm172, %v1376, 0.0
    %1378 = vadd.xlane.f32.xlu0 %v1377
    %v1379 = vpop.xlane.xlu0 %1378
    %v1380 = vsub.f32 %v1214, %v1379
    %v1381 = vmul.f32 %v1346, %v1343
    %v1382 = vsel %vm172, %v1381, 0.0
    %1383 = vadd.xlane.f32.xlu0 %v1382
    %v1384 = vpop.xlane.xlu0 %1383
    %v1385 = vsub.f32 %v1219, %v1384
    %vm1386 = vcmp.eq.s32.totalorder %v50, 126
    %v1387 = vsel %vm1386, %v1380, %v1372
    %vm1388 = vcmp.eq.s32.totalorder %v50, 127
    %v1389 = vsel %vm1388, %v1385, %v1387
    %1390 = vst [vmem:[#allocation5] sm:$0x1] %v1389
    // Predicated region
    $region26: #{tpu_custom_call.1} parent=1 // pred_check
      _
    $region27: #{tpu_custom_call.1} parent=1 // pred_check_branch
      %1392 = sbr.rel (0) target = $region29
    $region28: #{tpu_custom_call.1} parent=1 // pred_region
      %1394 = vsyncadd [#allocation4], 0
      %s1396 = sshll.u32 [#allocation5], 4
      %s1397 = int_to_ptr.vmem [resolvable:$true] %s1396
      %s1398 = sshll.u32 %s5, 4
      %s1399 = int_to_ptr.hbm [resolvable:$true] %s1398
      %1401 = dma.vmem_to_hbm [thread:$0]  %s1397, 16, %s1399, [#allocation4]
    $region29: #{tpu_custom_call.1} parent=1 // pred_fallthru
      _
    // Predicated region
    $region30: #{tpu_custom_call.1} parent=1 // pred_check
      _
    $region31: #{tpu_custom_call.1} parent=1 // pred_check_branch
      %1403 = sbr.rel (0) target = $region33
    $region32: #{tpu_custom_call.1} parent=1 // pred_region
      %1405 = dma.done [#allocation4], 16
    $region33: #{tpu_custom_call.1} parent=1 // pred_fallthru
      _
    %1406 = vsyncpa [#allocation3], 1
    %1407 = vsyncpa [#allocation4], 1

</llo_original>
